<compile_context>
chip_gen: v6e
topology: v6e:2x2x1
jax: 0.10.0
libtpu: 0.0.40
codegen_flags: <defaults>
</compile_context>

<pallas_src>
import numpy as np
import jax
import jax.numpy as jnp
from jax.experimental import pallas as pl
from jax.experimental.pallas import tpu as pltpu

# ---- module hyper-parameters (scaled-down, deterministic) -------------------
SAMPLE_RATE = 16000
N_FFT = 256                        # (module default 1024; scaled for the example)
HOP = 64                           # (module default 256) -> N_FFT // HOP == 4, as in prod
OUT_SIZE = 256                     # time_dim (module default 250)
F_BINS = N_FFT // 2 + 1            # 129 power-spectrogram frequency bins
F_PAD = ((F_BINS + 7) // 8) * 8    # 136: minimal sublane-aligned frequency padding
N_HOPS = N_FFT // HOP              # 4 hop-chunks per analysis frame
AMIN = 1e-10                       # torchaudio AmplitudeToDB amin
DB_MULT = 10.0                     # power -> dB multiplier (stype="power")

DATA_LOUD_MU = -20.0               # deterministic "dataset" statistics
DATA_LOUD_STD = 15.0

T_PAD = ((OUT_SIZE + 127) // 128) * 128    # lane-padded frame count (== 256 here)
X_COLS = T_PAD + N_HOPS                    # hop-columns the kernel needs per batch elem

assert N_FFT % HOP == 0
assert F_PAD % 8 == 0 and (2 * F_PAD) % 16 == 0


def a_weighting(frequencies):
    """librosa.core.A_weighting (min_db=-80), in numpy."""
    f_sq = np.asarray(frequencies, dtype=np.float64) ** 2.0
    const = np.array([12194.217, 20.598997, 107.65265, 737.86223]) ** 2.0
    with np.errstate(divide="ignore"):
        w = 2.0 + 20.0 * (
            np.log10(const[0]) + 2.0 * np.log10(f_sq)
            - np.log10(f_sq + const[0])
            - np.log10(f_sq + const[1])
            - 0.5 * np.log10(f_sq + const[2])
            - 0.5 * np.log10(f_sq + const[3])
        )
    return np.maximum(-80.0, w)


def _centre_freqs():
    # Matches the module exactly: np.linspace(0, sr // 2, n_fft // 2 + 2)[:-1]
    return np.linspace(0, SAMPLE_RATE // 2, N_FFT // 2 + 2)[:-1]


# ---- Pallas kernel -----------------------------------------------------------
def loudness_kernel(scal_ref, x_ref, basis_ref, clamp_ref, out_ref, frame_scr):
    # scal_ref  : (2,) SMEM f32        [mu, 1/std]
    # x_ref     : (1, HOP, X_COLS) bf16  hop-transposed padded audio of one batch elem:
    #                                    x_ref[0, m, j] = audio_pad[j*HOP + m]
    # basis_ref : (2*F_PAD, N_FFT) bf16  rows = [aw*win*cos | -aw*win*sin], zero pad rows
    # clamp_ref : (F_PAD, 1) f32         AMIN * aw^2 (0 in pad rows -> pad rows sum to 0)
    # out_ref   : (1, T_PAD) f32         normalized loudness per frame (lane-dense store)
    # frame_scr : (N_FFT, T_PAD) bf16 VMEM scratch — the framed tile lives only in VMEM.

    # Frame t, sample n = h*HOP + m  ->  audio_pad[(t+h)*HOP + m] = x_ref[0, m, t+h].
    # Build the transposed frame tile from N_HOPS statically-shifted column windows,
    # then run one full-K MXU matmul (better MXU K-utilization than 4 K=HOP matmuls).
    for h in range(N_HOPS):                                   # static unroll (4)
        frame_scr[h * HOP:(h + 1) * HOP, :] = x_ref[0, :, h:h + T_PAD]

    res = jnp.dot(basis_ref[...], frame_scr[...],
                  preferred_element_type=jnp.float32)         # (2*F_PAD, T_PAD)
    real = res[:F_PAD, :]
    imag = res[F_PAD:, :]
    power = real * real + imag * imag                         # aw^2 * |STFT|^2

    # Exact fold of AmplitudeToDB -> +A-weighting -> dB->amplitude (aw in the basis):
    #   sqrt(max(aw^2*p, AMIN*aw^2)) == aw * sqrt(max(p, AMIN)) == 10**((10*log10(max(p,AMIN)) + A)/20)
    # Padded rows: aw == 0 and clamp == 0 -> contribute exactly 0 to the sum.
    amp = jnp.sqrt(jnp.maximum(power, clamp_ref[...]))        # (F_PAD, T_PAD)
    mean_amp = jnp.sum(amp, axis=0, keepdims=True) * (1.0 / F_BINS)   # exact 129-bin mean
    loud = DB_MULT * jnp.log10(jnp.maximum(mean_amp, AMIN))   # AmplitudeToDB again
    out_ref[...] = (loud + scal_ref[0]) * scal_ref[1]


# ---- constant tables ---------------------------------------------------------
def _dft_basis_weighted():
    """[aw*win*cos ; -aw*win*sin] real-DFT basis, zero-padded to 2*F_PAD rows (bf16),
    plus the matching AMIN*aw^2 clamp column (f32)."""
    n = np.arange(N_FFT)
    f = np.arange(F_BINS)
    win = 0.5 * (1.0 - np.cos(2.0 * np.pi * n / N_FFT))        # torch.hann_window (periodic)
    ang = 2.0 * np.pi * np.outer(f, n) / N_FFT                 # (F_BINS, N_FFT)
    aw = 10.0 ** (a_weighting(_centre_freqs()) / 20.0)         # linear A-weighting, (F_BINS,)

    basis = np.zeros((2 * F_PAD, N_FFT), dtype=np.float32)
    basis[:F_BINS, :] = (np.cos(ang) * win[None, :]) * aw[:, None]
    basis[F_PAD:F_PAD + F_BINS, :] = (-np.sin(ang) * win[None, :]) * aw[:, None]

    clamp = np.zeros((F_PAD, 1), dtype=np.float32)
    clamp[:F_BINS, 0] = AMIN * aw * aw
    return jnp.asarray(basis, dtype=jnp.bfloat16), jnp.asarray(clamp)


# ---- glue / wrapper ----------------------------------------------------------
def loudness_encoder(x, data_loud_mu=DATA_LOUD_MU, data_loud_std=DATA_LOUD_STD):
    B, _ = x.shape
    T = OUT_SIZE

    # Center (reflect) pad, cast to bf16 BEFORE any relayout, then hop-transpose:
    # X[b, m, j] = audio_pad[b, j*HOP + m].  This moves ~1x the audio bytes — the
    # 4x framed tensor of the previous version never exists in HBM.
    pad = N_FFT // 2
    x_pad = jnp.pad(x, ((0, 0), (pad, pad)), mode="reflect").astype(jnp.bfloat16)
    need = HOP * X_COLS
    cur = x_pad.shape[1]
    if cur < need:
        x_pad = jnp.pad(x_pad, ((0, 0), (0, need - cur)))
    elif cur > need:
        x_pad = x_pad[:, :need]
    x_hops = x_pad.reshape(B, X_COLS, HOP).transpose(0, 2, 1)   # (B, HOP, X_COLS) bf16
    # TODO(synk): the hop-transpose above is a tiny (1x audio, bf16) XLA relayout; it
    # could be removed entirely with memory_space=pl.ANY + an in-kernel strided DMA,
    # but at ~130 KB/batch even at production sizes it is noise.

    basis, clamp = _dft_basis_weighted()                        # (272, N_FFT) bf16, (136,1) f32
    scal = jnp.asarray([data_loud_mu, 1.0 / data_loud_std], dtype=jnp.float32)

    grid = (B,)   # even and >= 2 -> both v7x TensorCores busy; >= 4 at production batch

    cost = pl.CostEstimate(
        flops=B * 2 * (2 * F_PAD) * N_FFT * T_PAD,
        transcendentals=B * (F_PAD * T_PAD + T_PAD),
        bytes_accessed=B * (HOP * X_COLS * 2 + T_PAD * 4)
        + (2 * F_PAD) * N_FFT * 2 + F_PAD * 4,
    )

    out = pl.pallas_call(
        loudness_kernel,
        out_shape=jax.ShapeDtypeStruct((1, B * T_PAD), jnp.float32),
        grid=grid,
        in_specs=[
            pl.BlockSpec(memory_space=pltpu.MemorySpace.SMEM),        # [mu, 1/std]
            pl.BlockSpec((1, HOP, X_COLS), lambda b: (b, 0, 0)),      # hop-transposed audio
            # basis / clamp are grid-invariant (constant index_map) -> DMA'd once per
            # core.  (pipeline_mode=pl.Buffered(1) would single-buffer them; only
            # worth it for VMEM headroom at N_FFT=1024 on v7x.)
            pl.BlockSpec((2 * F_PAD, N_FFT), lambda b: (0, 0)),       # weighted DFT basis
            pl.BlockSpec((F_PAD, 1), lambda b: (0, 0)),               # AMIN * aw^2 column
        ],
        out_specs=pl.BlockSpec((1, T_PAD), lambda b: (0, b)),         # lane-dense output
        scratch_shapes=[pltpu.VMEM((N_FFT, T_PAD), jnp.bfloat16)],    # in-VMEM frame tile
        compiler_params=pltpu.CompilerParams(
            dimension_semantics=("parallel",)),
        cost_estimate=cost,
    )(scal, x_hops, basis, clamp)

    return out.reshape(B, T_PAD)[:, :T].reshape(B, T, 1)        # matches .unsqueeze(-1)


# ---- pure-JAX reference (original log/exp math, f32, XLA) --------------------
def loudness_reference(x, data_loud_mu=DATA_LOUD_MU, data_loud_std=DATA_LOUD_STD):
    B, _ = x.shape
    pad = N_FFT // 2
    x_pad = jnp.pad(x, ((0, 0), (pad, pad)), mode="reflect")
    starts = np.arange(OUT_SIZE) * HOP
    idx = starts[:, None] + np.arange(N_FFT)[None, :]           # (T, N_FFT)
    frames = x_pad[:, idx].astype(jnp.float32)                  # (B, T, N_FFT)

    n = np.arange(N_FFT)
    f = np.arange(F_BINS)
    win = 0.5 * (1.0 - np.cos(2.0 * np.pi * n / N_FFT))
    ang = 2.0 * np.pi * np.outer(n, f) / N_FFT
    cos_m = jnp.asarray((np.cos(ang) * win[:, None]).astype(np.float32))
    sin_m = jnp.asarray((-np.sin(ang) * win[:, None]).astype(np.float32))
    real = frames @ cos_m                                       # (B, T, F_BINS)
    imag = frames @ sin_m
    power = real * real + imag * imag
    db = DB_MULT * jnp.log10(jnp.maximum(power, AMIN))
    aw = jnp.asarray(a_weighting(_centre_freqs()), dtype=jnp.float32)[None, None, :]
    amp = 10.0 ** ((db + aw) / 20.0)
    loud = DB_MULT * jnp.log10(jnp.maximum(jnp.mean(amp, axis=-1), AMIN))   # (B, T)
    out = (loud + data_loud_mu) / data_loud_std
    return out[..., None]                                       # (B, T, 1)


if __name__ == "__main__":
    B = 2
    L = HOP * OUT_SIZE                       # 16384 samples -> >= OUT_SIZE frames
    key = jax.random.PRNGKey(0)
    x = jax.random.normal(key, (B, L), dtype=jnp.float32)

    out = jax.block_until_ready(loudness_encoder(x))
    ref = loudness_reference(x)

    assert out.shape == (B, OUT_SIZE, 1), out.shape
    assert bool(jnp.all(jnp.isfinite(out)))
    np.testing.assert_allclose(np.asarray(out), np.asarray(ref), rtol=5e-2, atol=5e-2)

    print("KERNEL_OK")
</pallas_src>

<mosaic_0001>
module attributes {stable_mosaic.version = 11 : i64} {
  func.func @loudness_kernel(%arg0: i32, %arg1: memref<2xf32, #tpu.memory_space<smem>>, %arg2: memref<1x64x260xbf16, #tpu.memory_space<vmem>>, %arg3: memref<272x256xbf16, #tpu.memory_space<vmem>>, %arg4: memref<136x1xf32, #tpu.memory_space<vmem>>, %arg5: memref<1x256xf32, #tpu.memory_space<vmem>>, %arg6: memref<256x256xbf16, #tpu.memory_space<vmem>>) attributes {dimension_semantics = [#tpu.dimension_semantics<parallel>], iteration_bounds = array<i64: 2>, scalar_prefetch = 0 : i64, scratch_operands = 1 : i64, tpu.core_type = #tpu.core_type<tc>, window_params = [{transform_indices = @transform_0, window_bounds = array<i64: 2>}, {transform_indices = @transform_1, window_bounds = array<i64: 1, 64, 260>}, {pipeline_mode = #tpu.pipeline_mode<synchronous>, transform_indices = @transform_2, window_bounds = array<i64: 272, 256>}, {pipeline_mode = #tpu.pipeline_mode<synchronous>, transform_indices = @transform_3, window_bounds = array<i64: 136, 1>}, {transform_indices = @transform_4, window_bounds = array<i64: 1, 256>}]} {
    %c0 = arith.constant 0 : index
    %c0_0 = arith.constant 0 : index
    %c0_1 = arith.constant 0 : index
    %0 = vector.load %arg2[%c0, %c0_0, %c0_1] : memref<1x64x260xbf16, #tpu.memory_space<vmem>>, vector<1x64x256xbf16>
    %1 = vector.shape_cast %0 : vector<1x64x256xbf16> to vector<64x256xbf16>
    %c0_2 = arith.constant 0 : index
    %c0_3 = arith.constant 0 : index
    %2 = vector.load %arg6[%c0_2, %c0_3] : memref<256x256xbf16, #tpu.memory_space<vmem>>, vector<64x256xbf16>
    tpu.vector_store %arg6[%c0_2, %c0_3], %1 {strides = array<i32>} : memref<256x256xbf16, #tpu.memory_space<vmem>>, vector<64x256xbf16>,
    %c0_4 = arith.constant 0 : index
    %c0_5 = arith.constant 0 : index
    %c1 = arith.constant 1 : index
    %3 = vector.load %arg2[%c0_4, %c0_5, %c1] : memref<1x64x260xbf16, #tpu.memory_space<vmem>>, vector<1x64x256xbf16>
    %4 = vector.shape_cast %3 : vector<1x64x256xbf16> to vector<64x256xbf16>
    %c64 = arith.constant 64 : index
    %c0_6 = arith.constant 0 : index
    %5 = vector.load %arg6[%c64, %c0_6] : memref<256x256xbf16, #tpu.memory_space<vmem>>, vector<64x256xbf16>
    tpu.vector_store %arg6[%c64, %c0_6], %4 {strides = array<i32>} : memref<256x256xbf16, #tpu.memory_space<vmem>>, vector<64x256xbf16>,
    %c0_7 = arith.constant 0 : index
    %c0_8 = arith.constant 0 : index
    %c2 = arith.constant 2 : index
    %6 = vector.load %arg2[%c0_7, %c0_8, %c2] : memref<1x64x260xbf16, #tpu.memory_space<vmem>>, vector<1x64x256xbf16>
    %7 = vector.shape_cast %6 : vector<1x64x256xbf16> to vector<64x256xbf16>
    %c128 = arith.constant 128 : index
    %c0_9 = arith.constant 0 : index
    %8 = vector.load %arg6[%c128, %c0_9] : memref<256x256xbf16, #tpu.memory_space<vmem>>, vector<64x256xbf16>
    tpu.vector_store %arg6[%c128, %c0_9], %7 {strides = array<i32>} : memref<256x256xbf16, #tpu.memory_space<vmem>>, vector<64x256xbf16>,
    %c0_10 = arith.constant 0 : index
    %c0_11 = arith.constant 0 : index
    %c3 = arith.constant 3 : index
    %9 = vector.load %arg2[%c0_10, %c0_11, %c3] : memref<1x64x260xbf16, #tpu.memory_space<vmem>>, vector<1x64x256xbf16>
    %10 = vector.shape_cast %9 : vector<1x64x256xbf16> to vector<64x256xbf16>
    %c192 = arith.constant 192 : index
    %c0_12 = arith.constant 0 : index
    %11 = vector.load %arg6[%c192, %c0_12] : memref<256x256xbf16, #tpu.memory_space<vmem>>, vector<64x256xbf16>
    tpu.vector_store %arg6[%c192, %c0_12], %10 {strides = array<i32>} : memref<256x256xbf16, #tpu.memory_space<vmem>>, vector<64x256xbf16>,
    %c0_13 = arith.constant 0 : index
    %c0_14 = arith.constant 0 : index
    %12 = vector.load %arg3[%c0_13, %c0_14] : memref<272x256xbf16, #tpu.memory_space<vmem>>, vector<272x256xbf16>
    %c0_15 = arith.constant 0 : index
    %c0_16 = arith.constant 0 : index
    %13 = vector.load %arg6[%c0_15, %c0_16] : memref<256x256xbf16, #tpu.memory_space<vmem>>, vector<256x256xbf16>
    %cst = arith.constant dense<0.000000e+00> : vector<272x256xf32>
    %14 = tpu.matmul %12, %13, %cst {dimension_numbers = #tpu.dot_dimension_numbers<[1], [0], [0], [1], [0, 0, 1, 1], [], []>} : vector<272x256xbf16>, vector<256x256xbf16>, vector<272x256xf32> -> vector<272x256xf32>
    %15 = vector.extract_strided_slice %14 {offsets = [0, 0], sizes = [136, 256], strides = [1, 1]} : vector<272x256xf32> to vector<136x256xf32>
    %16 = vector.extract_strided_slice %14 {offsets = [136, 0], sizes = [136, 256], strides = [1, 1]} : vector<272x256xf32> to vector<136x256xf32>
    %17 = arith.mulf %15, %15 : vector<136x256xf32>
    %18 = arith.mulf %16, %16 : vector<136x256xf32>
    %19 = arith.addf %17, %18 : vector<136x256xf32>
    %c0_17 = arith.constant 0 : index
    %c0_18 = arith.constant 0 : index
    %20 = vector.load %arg4[%c0_17, %c0_18] : memref<136x1xf32, #tpu.memory_space<vmem>>, vector<136x1xf32>
    %21 = vector.broadcast %20 : vector<136x1xf32> to vector<136x256xf32>
    %22 = arith.maximumf %19, %21 : vector<136x256xf32>
    %23 = math.sqrt %22 : vector<136x256xf32>
    %cst_19 = arith.constant dense<0.000000e+00> : vector<256xf32>
    %24 = vector.multi_reduction <add>, %23, %cst_19 [0] : vector<136x256xf32> to vector<256xf32>
    %25 = vector.shape_cast %24 : vector<256xf32> to vector<1x256xf32>
    %cst_20 = arith.constant 0.00775193795 : f32
    %26 = vector.broadcast %cst_20 : f32 to vector<1x256xf32>
    %27 = arith.mulf %25, %26 : vector<1x256xf32>
    %cst_21 = arith.constant 1.000000e-10 : f32
    %28 = vector.broadcast %cst_21 : f32 to vector<1x256xf32>
    %29 = arith.maximumf %27, %28 : vector<1x256xf32>
    %30 = math.log %29 : vector<1x256xf32>
    %cst_22 = arith.constant 0.434294492 : f32
    %31 = vector.broadcast %cst_22 : f32 to vector<1x256xf32>
    %32 = arith.mulf %30, %31 : vector<1x256xf32>
    %cst_23 = arith.constant 1.000000e+01 : f32
    %33 = vector.broadcast %cst_23 : f32 to vector<1x256xf32>
    %34 = arith.mulf %33, %32 : vector<1x256xf32>
    %c0_24 = arith.constant 0 : index
    %35 = memref.load %arg1[%c0_24] : memref<2xf32, #tpu.memory_space<smem>>
    %36 = vector.broadcast %35 : f32 to vector<1x256xf32>
    %37 = arith.addf %34, %36 : vector<1x256xf32>
    %c1_25 = arith.constant 1 : index
    %38 = memref.load %arg1[%c1_25] : memref<2xf32, #tpu.memory_space<smem>>
    %39 = vector.broadcast %38 : f32 to vector<1x256xf32>
    %40 = arith.mulf %37, %39 : vector<1x256xf32>
    %c0_26 = arith.constant 0 : index
    %c0_27 = arith.constant 0 : index
    %41 = vector.load %arg5[%c0_26, %c0_27] : memref<1x256xf32, #tpu.memory_space<vmem>>, vector<1x256xf32>
    tpu.vector_store %arg5[%c0_26, %c0_27], %40 {strides = array<i32>} : memref<1x256xf32, #tpu.memory_space<vmem>>, vector<1x256xf32>,
    return
  }
  func.func @transform_0(%arg0: i32) -> i32 {
    %c0_i32 = arith.constant 0 : i32
    %c0_i32_0 = arith.constant 0 : i32
    return %c0_i32 : i32
  }
  func.func @transform_1(%arg0: i32) -> (i32, i32, i32) {
    %c0_i32 = arith.constant 0 : i32
    %c0_i32_0 = arith.constant 0 : i32
    %c0_i32_1 = arith.constant 0 : i32
    return %arg0, %c0_i32, %c0_i32_0 : i32, i32, i32
  }
  func.func @transform_2(%arg0: i32) -> (i32, i32) {
    %c0_i32 = arith.constant 0 : i32
    %c0_i32_0 = arith.constant 0 : i32
    %c0_i32_1 = arith.constant 0 : i32
    return %c0_i32, %c0_i32_0 : i32, i32
  }
  func.func @transform_3(%arg0: i32) -> (i32, i32) {
    %c0_i32 = arith.constant 0 : i32
    %c0_i32_0 = arith.constant 0 : i32
    %c0_i32_1 = arith.constant 0 : i32
    return %c0_i32, %c0_i32_0 : i32, i32
  }
  func.func @transform_4(%arg0: i32) -> (i32, i32) {
    %c0_i32 = arith.constant 0 : i32
    %c0_i32_0 = arith.constant 0 : i32
    return %c0_i32, %arg0 : i32, i32
  }
}

</mosaic_0001>

<llo_original>
// kernel: tpu_custom_call.1
$region0: #{tpu_custom_call.1}
  #allocation0 [shape = 'u32[]', space=smem, size = 0x4, offset = 0x4, fixed_abs, tag = 'smem constant byte address 0x4 - core index']
  #allocation1 [shape = 'u32[144,128]{1,0:T(1,128)}', space=vmem, size = 0x12000, scoped, tag = 'internal scratch']
  #allocation2 [shape = 'bf16[256,256]{1,0:T(8,128)(2,1)}', space=vmem, size = 0x20000, scoped, tag = 'scratch operand']
  %s0 = inlined_call_operand.vmem [shape: f32[2], index: 0, kind: input, shape index: {}]
  %s1 = inlined_call_operand.hbm [shape: bf16[2,64,260], index: 1, kind: input, shape index: {}]
  %s2 = inlined_call_operand.hbm [shape: bf16[272,256], index: 2, kind: input, shape index: {}]
  %s3 = inlined_call_operand.vmem [shape: f32[136,1], index: 3, kind: input, shape index: {}]
  %s4 = inlined_call_operand.hbm [shape: f32[1,512], index: 4, kind: output, shape index: {}]
  %s5 = sld [smem:[#allocation0]]
  $region61: #{tpu_custom_call.1} parent=0
    _
  %s7 = ssub.s32 1, %s5
  %s8 = scalar_select 0, %s7, %s5
  $region1: #{tpu_custom_call.1} parent=0
    #allocation3 [shape = 'u8[512]{0}', space=smem, size = 0x200, scoped, tag = 'input window, operand 0, single buffered']
    #allocation4 [shape = 's32[2]{0}', space=sflag, size = 0x8, scoped, tag = 'scoped memory for tpu_custom_call.1']
    #allocation5 [shape = 's32[2]{0}', space=sflag, size = 0x8, scoped, tag = 'scoped memory for tpu_custom_call.1']
    #allocation6 [shape = 's32[2]{0}', space=sflag, size = 0x8, scoped, tag = 'scoped memory for tpu_custom_call.1']
    #allocation7 [shape = 'u8[98304]{0}', space=vmem, size = 0x18000, scoped, tag = 'input window, operand 1']
    #allocation8 [shape = 'u8[139264]{0}', space=vmem, size = 0x22000, scoped, tag = 'input window, operand 2, single buffered']
    #allocation9 [shape = 's32[1]{0}', space=sflag, size = 0x4, scoped, tag = 'scoped memory for tpu_custom_call.1']
    #allocation10 [shape = 'u8[2048]{0}', space=vmem, size = 0x800, scoped, tag = 'output window, operand 0']
    %9 = vsyncpa [#allocation6], 0
    %10 = vsyncpa [#allocation4], 0
    %s11 = scalar_lea.sflag [#allocation4], 1
    %12 = vsyncpa %s11, 0
    %13 = vsyncpa [#allocation9], 0
    %14 = vsyncpa [#allocation5], 0
    %s15 = scalar_lea.sflag [#allocation5], 1
    %16 = vsyncpa %s15, 0
    loop: start=0, step=1, limit=4
    $region2: #{tpu_custom_call.1} parent=1 // loop_pre_header
      _
    $region3: #{tpu_custom_call.1} parent=1 // loop_header
      %s18 = sphi 0, %s22
      %p19 = scmp.ge.s32.totalorder %s18, 4
      %s26 = sphi 0, %s26
      %s28 = sphi 0, %s26
      %s29 = sphi 0, %s28
      %s43 = sphi 0, %s29
      %s49 = sphi 0, %s51
      %s52 = sphi 0, %s49
      %s53 = sphi 0, %s52
      %s69 = sphi 0, %s53
      %s73 = sphi 0, %s73
      %s75 = sphi 0, %s73
      %s76 = sphi 0, %s75
      %s90 = sphi 0, %s76
      %s94 = sphi 0, %s94
      %s96 = sphi 0, %s94
      %s97 = sphi 0, %s96
      %s111 = sphi 0, %s97
      %s117 = sphi 0, %s119
      %s120 = sphi 0, %s117
      %s121 = sphi 0, %s120
      %s137 = sphi 0, %s121
    $region4: #{tpu_custom_call.1} parent=1 // loop_header_branch
      %21 = sbr.rel (%p19) target = $region8
    $region5: #{tpu_custom_call.1} parent=1 // loop_body
      %s23 = ssub.s32 %s18, 1
      %s24 = ssub.s32 %s18, 2
      %s25 = sadd.s32 %s18, 1
      %s27 = sadd.s32 %s26, 1
      %p30 = scmp.eq.s32.totalorder %s18, 1
      %p31 = scmp.ne.s32.totalorder %s26, %s28
      %p32 = scmp.eq.s32.totalorder %s18, 0
      %p33 = por %p31, %p32
      %p34 = scmp.ne.s32.totalorder %s26, %s28
      %p35 = scmp.eq.s32.totalorder %s23, 1
      %p36 = por %p34, %p35
      %p37 = scmp.ne.s32.totalorder %s28, %s29
      %p38 = scmp.eq.s32.totalorder %s23, 0
      %p39 = por %p37, %p38
      %p40 = scmp.ne.s32.totalorder %s28, %s29
      %p41 = scmp.eq.s32.totalorder %s24, 1
      %p42 = por %p40, %p41
      %p44 = scmp.ne.s32.totalorder %s29, %s43
      %p45 = scmp.eq.s32.totalorder %s24, 0
      %p46 = por %p44, %p45
      %s47 = ssub.s32 %s18, %s25
      %p48 = scmp.eq.s32.totalorder %s47, 0
      %s50 = sadd.s32 %s49, 1
      %s51 = scalar_select %p48, %s49, %s50
      %p54 = pneg %p48
      %p55 = scmp.eq.s32.totalorder %s18, 1
      %p56 = por %p54, %p55
      %p57 = scmp.ne.s32.totalorder %s49, %s52
      %p58 = scmp.eq.s32.totalorder %s18, 0
      %p59 = por %p57, %p58
      %p60 = scmp.ne.s32.totalorder %s49, %s52
      %p61 = scmp.eq.s32.totalorder %s23, 1
      %p62 = por %p60, %p61
      %p63 = scmp.ne.s32.totalorder %s52, %s53
      %p64 = scmp.eq.s32.totalorder %s23, 0
      %p65 = por %p63, %p64
      %p66 = scmp.ne.s32.totalorder %s52, %s53
      %p67 = scmp.eq.s32.totalorder %s24, 1
      %p68 = por %p66, %p67
      %p70 = scmp.ne.s32.totalorder %s53, %s69
      %p71 = scmp.eq.s32.totalorder %s24, 0
      %p72 = por %p70, %p71
      %s74 = sadd.s32 %s73, 1
      %p77 = scmp.eq.s32.totalorder %s18, 1
      %p78 = scmp.ne.s32.totalorder %s73, %s75
      %p79 = scmp.eq.s32.totalorder %s18, 0
      %p80 = por %p78, %p79
      %p81 = scmp.ne.s32.totalorder %s73, %s75
      %p82 = scmp.eq.s32.totalorder %s23, 1
      %p83 = por %p81, %p82
      %p84 = scmp.ne.s32.totalorder %s75, %s76
      %p85 = scmp.eq.s32.totalorder %s23, 0
      %p86 = por %p84, %p85
      %p87 = scmp.ne.s32.totalorder %s75, %s76
      %p88 = scmp.eq.s32.totalorder %s24, 1
      %p89 = por %p87, %p88
      %p91 = scmp.ne.s32.totalorder %s76, %s90
      %p92 = scmp.eq.s32.totalorder %s24, 0
      %p93 = por %p91, %p92
      %s95 = sadd.s32 %s94, 1
      %p98 = scmp.eq.s32.totalorder %s18, 1
      %p99 = scmp.ne.s32.totalorder %s94, %s96
      %p100 = scmp.eq.s32.totalorder %s18, 0
      %p101 = por %p99, %p100
      %p102 = scmp.ne.s32.totalorder %s94, %s96
      %p103 = scmp.eq.s32.totalorder %s23, 1
      %p104 = por %p102, %p103
      %p105 = scmp.ne.s32.totalorder %s96, %s97
      %p106 = scmp.eq.s32.totalorder %s23, 0
      %p107 = por %p105, %p106
      %p108 = scmp.ne.s32.totalorder %s96, %s97
      %p109 = scmp.eq.s32.totalorder %s24, 1
      %p110 = por %p108, %p109
      %p112 = scmp.ne.s32.totalorder %s97, %s111
      %p113 = scmp.eq.s32.totalorder %s24, 0
      %p114 = por %p112, %p113
      %s115 = ssub.s32 %s18, %s25
      %p116 = scmp.eq.s32.totalorder %s115, 0
      %s118 = sadd.s32 %s117, 1
      %s119 = scalar_select %p116, %s117, %s118
      %p122 = pneg %p116
      %p123 = scmp.eq.s32.totalorder %s18, 1
      %p124 = por %p122, %p123
      %p125 = scmp.ne.s32.totalorder %s117, %s120
      %p126 = scmp.eq.s32.totalorder %s18, 0
      %p127 = por %p125, %p126
      %p128 = scmp.ne.s32.totalorder %s117, %s120
      %p129 = scmp.eq.s32.totalorder %s23, 1
      %p130 = por %p128, %p129
      %p131 = scmp.ne.s32.totalorder %s120, %s121
      %p132 = scmp.eq.s32.totalorder %s23, 0
      %p133 = por %p131, %p132
      %p134 = scmp.ne.s32.totalorder %s120, %s121
      %p135 = scmp.eq.s32.totalorder %s24, 1
      %p136 = por %p134, %p135
      %p138 = scmp.ne.s32.totalorder %s121, %s137
      %p139 = scmp.eq.s32.totalorder %s24, 0
      %p140 = por %p138, %p139
      %p141 = scmp.le.s32.totalorder 1, %s18
      %p142 = scmp.lt.s32.totalorder %s18, 3
      %p143 = pnand %p141, %p142
      %p144 = pneg %p143
      // Predicated region
      $region9: #{tpu_custom_call.1} parent=5 // pred_check
        _
      $region10: #{tpu_custom_call.1} parent=5 // pred_check_branch
        %146 = sbr.rel (%p143) target = $region12
      $region11: #{tpu_custom_call.1} parent=5 // pred_region
        %s147 = ssub.s32 %s18, 1
        // Predicated region
        $region13: #{tpu_custom_call.1} parent=11 // pred_check
          %p148 = pneg %p39
        $region14: #{tpu_custom_call.1} parent=11 // pred_check_branch
          %150 = sbr.rel (%p148) target = $region16
        $region15: #{tpu_custom_call.1} parent=11 // pred_region
          %s152 = ssub.s32 16, 16
          %153 = vsyncadd [#allocation6], %s152
          %s155 = sshll.u32 %s0, 4
          %s156 = int_to_ptr.vmem [resolvable:$true] %s155
          %158 = dma.vmem_to_smem %s156, 16, [#allocation3], [#allocation6]
        $region16: #{tpu_custom_call.1} parent=11 // pred_fallthru
          _
        // Predicated region
        $region17: #{tpu_custom_call.1} parent=11 // pred_check
          %p159 = pneg %p86
        $region18: #{tpu_custom_call.1} parent=11 // pred_check_branch
          %161 = sbr.rel (%p159) target = $region20
        $region19: #{tpu_custom_call.1} parent=11 // pred_region
          %s163 = ssub.s32 4352, 4352
          %164 = vsyncadd [#allocation9], %s163
          %s165 = sshll.u32 [#allocation8], 4
          %s166 = int_to_ptr.vmem [resolvable:$true] %s165
          %171 = dma.hbm_to_vmem [thread:$0]  %s2, 4352, %s166, [#allocation9], 128, 128, 8
        $region20: #{tpu_custom_call.1} parent=11 // pred_fallthru
          _
        // Predicated region
        $region21: #{tpu_custom_call.1} parent=11 // pred_check
          %p172 = pneg %p107
        $region22: #{tpu_custom_call.1} parent=11 // pred_check_branch
          %174 = sbr.rel (%p172) target = $region24
        $region23: #{tpu_custom_call.1} parent=11 // pred_region
          _
        $region24: #{tpu_custom_call.1} parent=11 // pred_fallthru
          _
      $region12: #{tpu_custom_call.1} parent=5 // pred_fallthru
        _
      %p175 = scmp.lt.s32.totalorder %s18, 2
      // Predicated region
      $region25: #{tpu_custom_call.1} parent=5 // pred_check
        %p176 = pneg %p175
      $region26: #{tpu_custom_call.1} parent=5 // pred_check_branch
        %178 = sbr.rel (%p176) target = $region28
      $region27: #{tpu_custom_call.1} parent=5 // pred_region
        // Predicated region
        $region29: #{tpu_custom_call.1} parent=27 // pred_check
          %p179 = pneg %p59
        $region30: #{tpu_custom_call.1} parent=27 // pred_check_branch
          %181 = sbr.rel (%p179) target = $region32
        $region31: #{tpu_custom_call.1} parent=27 // pred_region
          %s182 = sand.u32 %s49, 1
          %s183 = scalar_lea.sflag [#allocation4], %s182
          %s184 = sand.u32 %s49, 1
          %s185 = smul.addr %s184, 96
          %s186 = scalar_lea.vmem [#allocation7], %s185
          %s188 = ssub.s32 1536, 1536
          %189 = vsyncadd %s183, %s188
          %s190 = smul.addr %s18, 24
          %s191 = smul.addr %s190, 64
          %s192 = scalar_lea.hbm %s1, %s191
          %s193 = sshll.u32 %s186, 4
          %s194 = int_to_ptr.vmem [resolvable:$true] %s193
          %199 = dma.hbm_to_vmem [thread:$0]  %s192, 1536, %s194, %s183, 192, 192, 12
        $region32: #{tpu_custom_call.1} parent=27 // pred_fallthru
          _
      $region28: #{tpu_custom_call.1} parent=5 // pred_fallthru
        _
      %p200 = scmp.le.s32.totalorder 1, %s18
      %p201 = scmp.lt.s32.totalorder %s18, 3
      %p202 = pnand %p200, %p201
      %p203 = pneg %p202
      // Predicated region
      $region33: #{tpu_custom_call.1} parent=5 // pred_check
        _
      $region34: #{tpu_custom_call.1} parent=5 // pred_check_branch
        %205 = sbr.rel (%p202) target = $region36
      $region35: #{tpu_custom_call.1} parent=5 // pred_region
        %s206 = ssub.s32 %s18, 1
        // Predicated region
        $region37: #{tpu_custom_call.1} parent=35 // pred_check
          %p207 = pneg %p39
        $region38: #{tpu_custom_call.1} parent=35 // pred_check_branch
          %209 = sbr.rel (%p207) target = $region40
        $region39: #{tpu_custom_call.1} parent=35 // pred_region
          %210 = dma.done [#allocation6], 16
        $region40: #{tpu_custom_call.1} parent=35 // pred_fallthru
          _
        %s211 = sand.u32 %s52, 1
        %s212 = scalar_lea.sflag [#allocation4], %s211
        %s213 = sand.u32 %s52, 1
        %s214 = smul.addr %s213, 96
        %s215 = scalar_lea.vmem [#allocation7], %s214
        // Predicated region
        $region41: #{tpu_custom_call.1} parent=35 // pred_check
          %p216 = pneg %p65
        $region42: #{tpu_custom_call.1} parent=35 // pred_check_branch
          %218 = sbr.rel (%p216) target = $region44
        $region43: #{tpu_custom_call.1} parent=35 // pred_region
          %219 = dma.done %s212, 1536
        $region44: #{tpu_custom_call.1} parent=35 // pred_fallthru
          _
        // Predicated region
        $region45: #{tpu_custom_call.1} parent=35 // pred_check
          %p220 = pneg %p86
        $region46: #{tpu_custom_call.1} parent=35 // pred_check_branch
          %222 = sbr.rel (%p220) target = $region48
        $region47: #{tpu_custom_call.1} parent=35 // pred_region
          %223 = dma.done [#allocation9], 4352
        $region48: #{tpu_custom_call.1} parent=35 // pred_fallthru
          _
        %224 = sfence
        %p225 = pneg %p39
        %p226 = pneg %p36
        %s227 = sand.u32 %s52, 1
        %s228 = scalar_lea.sflag [#allocation4], %s227
        %s229 = sand.u32 %s52, 1
        %s230 = smul.addr %s229, 96
        %s231 = scalar_lea.vmem [#allocation7], %s230
        %p232 = pneg %p65
        %p233 = pneg %p62
        %p234 = pneg %p86
        %p235 = pneg %p83
        %p236 = pneg %p107
        %p237 = pneg %p104
        %p238 = pneg %p133
        %p239 = pneg %p130
        %s240 = sand.u32 %s120, 1
        %s241 = scalar_lea.sflag [#allocation5], %s240
        %s242 = sand.u32 %s120, 1
        %s243 = smul.addr %s242, 2
        %s244 = scalar_lea.vmem [#allocation10], %s243
        %s245 = smul.u32 2, %s23
        %v246 = vld [vmem:[%s215] sm:$0xff]
        %v247 = vld [vmem:[%s215 + $0xc] sm:$0xff]
        %v248 = vld [vmem:[%s215 + $0x18] sm:$0xff]
        %v249 = vld [vmem:[%s215 + $0x24] sm:$0xff]
        %v250 = vld [vmem:[%s215 + $0x30] sm:$0xff]
        %v251 = vld [vmem:[%s215 + $0x3c] sm:$0xff]
        %v252 = vld [vmem:[%s215 + $0x48] sm:$0xff]
        %v253 = vld [vmem:[%s215 + $0x54] sm:$0xff]
        %254 = vst [vmem:[#allocation2] sm:$0xff] %v246
        %255 = vst [vmem:[#allocation2 + $0x8] sm:$0xff] %v247
        %256 = vst [vmem:[#allocation2 + $0x10] sm:$0xff] %v248
        %257 = vst [vmem:[#allocation2 + $0x18] sm:$0xff] %v249
        %258 = vst [vmem:[#allocation2 + $0x20] sm:$0xff] %v250
        %259 = vst [vmem:[#allocation2 + $0x28] sm:$0xff] %v251
        %260 = vst [vmem:[#allocation2 + $0x30] sm:$0xff] %v252
        %261 = vst [vmem:[#allocation2 + $0x38] sm:$0xff] %v253
        %v262 = vld [vmem:[%s215] sm:$0xff]
        %v263 = vld [vmem:[%s215 + $0x8] sm:$0xf]
        %v264 = vld [vmem:[%s215 + $0xc] sm:$0xff]
        %v265 = vld [vmem:[%s215 + $0x14] sm:$0xf]
        %v266 = vld [vmem:[%s215 + $0x18] sm:$0xff]
        %v267 = vld [vmem:[%s215 + $0x20] sm:$0xf]
        %v268 = vld [vmem:[%s215 + $0x24] sm:$0xff]
        %v269 = vld [vmem:[%s215 + $0x2c] sm:$0xf]
        %v270 = vld [vmem:[%s215 + $0x30] sm:$0xff]
        %v271 = vld [vmem:[%s215 + $0x38] sm:$0xf]
        %v272 = vld [vmem:[%s215 + $0x3c] sm:$0xff]
        %v273 = vld [vmem:[%s215 + $0x44] sm:$0xf]
        %v274 = vld [vmem:[%s215 + $0x48] sm:$0xff]
        %v275 = vld [vmem:[%s215 + $0x50] sm:$0xf]
        %v276 = vld [vmem:[%s215 + $0x54] sm:$0xff]
        %v277 = vld [vmem:[%s215 + $0x5c] sm:$0xf]
        %294 = vrot.lane.b32.xlu0 %v262, 127
        %v295 = vpop.permute.xlu0 %294
        %296 = vrot.lane.b32.xlu0 %v263, 127
        %v297 = vpop.permute.xlu0 %296
        %298 = vrot.lane.b32.xlu0 %v264, 127
        %v299 = vpop.permute.xlu0 %298
        %300 = vrot.lane.b32.xlu0 %v265, 127
        %v301 = vpop.permute.xlu0 %300
        %302 = vrot.lane.b32.xlu0 %v266, 127
        %v303 = vpop.permute.xlu0 %302
        %304 = vrot.lane.b32.xlu0 %v267, 127
        %v305 = vpop.permute.xlu0 %304
        %306 = vrot.lane.b32.xlu0 %v268, 127
        %v307 = vpop.permute.xlu0 %306
        %308 = vrot.lane.b32.xlu0 %v269, 127
        %v309 = vpop.permute.xlu0 %308
        %310 = vrot.lane.b32.xlu0 %v270, 127
        %v311 = vpop.permute.xlu0 %310
        %312 = vrot.lane.b32.xlu0 %v271, 127
        %v313 = vpop.permute.xlu0 %312
        %314 = vrot.lane.b32.xlu0 %v272, 127
        %v315 = vpop.permute.xlu0 %314
        %316 = vrot.lane.b32.xlu0 %v273, 127
        %v317 = vpop.permute.xlu0 %316
        %318 = vrot.lane.b32.xlu0 %v274, 127
        %v319 = vpop.permute.xlu0 %318
        %320 = vrot.lane.b32.xlu0 %v275, 127
        %v321 = vpop.permute.xlu0 %320
        %322 = vrot.lane.b32.xlu0 %v276, 127
        %v323 = vpop.permute.xlu0 %322
        %324 = vrot.lane.b32.xlu0 %v277, 127
        %v325 = vpop.permute.xlu0 %324
        %v326 = vrot.slane %v295, 4
        %v327 = vrot.slane %v297, 4
        %v328 = vrot.slane %v299, 4
        %v329 = vrot.slane %v301, 4
        %v330 = vrot.slane %v303, 4
        %v331 = vrot.slane %v305, 4
        %v332 = vrot.slane %v307, 4
        %v333 = vrot.slane %v309, 4
        %v334 = vrot.slane %v311, 4
        %v335 = vrot.slane %v313, 4
        %v336 = vrot.slane %v315, 4
        %v337 = vrot.slane %v317, 4
        %v338 = vrot.slane %v319, 4
        %v339 = vrot.slane %v321, 4
        %v340 = vrot.slane %v323, 4
        %v341 = vrot.slane %v325, 4
        %vm342 = vcmask 1043456
        %v343 = vsel %vm342, %v326, %v327
        %vm344 = vcmask 1039360
        %v345 = vsel %vm344, %v295, %v343
        %v346 = vsel %vm342, %v328, %v329
        %v347 = vsel %vm344, %v299, %v346
        %v348 = vsel %vm342, %v330, %v331
        %v349 = vsel %vm344, %v303, %v348
        %v350 = vsel %vm342, %v332, %v333
        %v351 = vsel %vm344, %v307, %v350
        %v352 = vsel %vm342, %v334, %v335
        %v353 = vsel %vm344, %v311, %v352
        %v354 = vsel %vm342, %v336, %v337
        %v355 = vsel %vm344, %v315, %v354
        %v356 = vsel %vm342, %v338, %v339
        %v357 = vsel %vm344, %v319, %v356
        %v358 = vsel %vm342, %v340, %v341
        %v359 = vsel %vm344, %v323, %v358
        %368 = vst [vmem:[#allocation2 + $0x40] sm:$0xff] %v345
        %369 = vst [vmem:[#allocation2 + $0x48] sm:$0xff] %v347
        %370 = vst [vmem:[#allocation2 + $0x50] sm:$0xff] %v349
        %371 = vst [vmem:[#allocation2 + $0x58] sm:$0xff] %v351
        %372 = vst [vmem:[#allocation2 + $0x60] sm:$0xff] %v353
        %373 = vst [vmem:[#allocation2 + $0x68] sm:$0xff] %v355
        %374 = vst [vmem:[#allocation2 + $0x70] sm:$0xff] %v357
        %375 = vst [vmem:[#allocation2 + $0x78] sm:$0xff] %v359
        %v376 = vld [vmem:[%s215] sm:$0xff]
        %v377 = vld [vmem:[%s215 + $0x8] sm:$0xf]
        %v378 = vld [vmem:[%s215 + $0xc] sm:$0xff]
        %v379 = vld [vmem:[%s215 + $0x14] sm:$0xf]
        %v380 = vld [vmem:[%s215 + $0x18] sm:$0xff]
        %v381 = vld [vmem:[%s215 + $0x20] sm:$0xf]
        %v382 = vld [vmem:[%s215 + $0x24] sm:$0xff]
        %v383 = vld [vmem:[%s215 + $0x2c] sm:$0xf]
        %v384 = vld [vmem:[%s215 + $0x30] sm:$0xff]
        %v385 = vld [vmem:[%s215 + $0x38] sm:$0xf]
        %v386 = vld [vmem:[%s215 + $0x3c] sm:$0xff]
        %v387 = vld [vmem:[%s215 + $0x44] sm:$0xf]
        %v388 = vld [vmem:[%s215 + $0x48] sm:$0xff]
        %v389 = vld [vmem:[%s215 + $0x50] sm:$0xf]
        %v390 = vld [vmem:[%s215 + $0x54] sm:$0xff]
        %v391 = vld [vmem:[%s215 + $0x5c] sm:$0xf]
        %408 = vrot.lane.b32.xlu0 %v376, 126
        %v409 = vpop.permute.xlu0 %408
        %410 = vrot.lane.b32.xlu0 %v377, 126
        %v411 = vpop.permute.xlu0 %410
        %412 = vrot.lane.b32.xlu0 %v378, 126
        %v413 = vpop.permute.xlu0 %412
        %414 = vrot.lane.b32.xlu0 %v379, 126
        %v415 = vpop.permute.xlu0 %414
        %416 = vrot.lane.b32.xlu0 %v380, 126
        %v417 = vpop.permute.xlu0 %416
        %418 = vrot.lane.b32.xlu0 %v381, 126
        %v419 = vpop.permute.xlu0 %418
        %420 = vrot.lane.b32.xlu0 %v382, 126
        %v421 = vpop.permute.xlu0 %420
        %422 = vrot.lane.b32.xlu0 %v383, 126
        %v423 = vpop.permute.xlu0 %422
        %424 = vrot.lane.b32.xlu0 %v384, 126
        %v425 = vpop.permute.xlu0 %424
        %426 = vrot.lane.b32.xlu0 %v385, 126
        %v427 = vpop.permute.xlu0 %426
        %428 = vrot.lane.b32.xlu0 %v386, 126
        %v429 = vpop.permute.xlu0 %428
        %430 = vrot.lane.b32.xlu0 %v387, 126
        %v431 = vpop.permute.xlu0 %430
        %432 = vrot.lane.b32.xlu0 %v388, 126
        %v433 = vpop.permute.xlu0 %432
        %434 = vrot.lane.b32.xlu0 %v389, 126
        %v435 = vpop.permute.xlu0 %434
        %436 = vrot.lane.b32.xlu0 %v390, 126
        %v437 = vpop.permute.xlu0 %436
        %438 = vrot.lane.b32.xlu0 %v391, 126
        %v439 = vpop.permute.xlu0 %438
        %v440 = vrot.slane %v409, 4
        %v441 = vrot.slane %v411, 4
        %v442 = vrot.slane %v413, 4
        %v443 = vrot.slane %v415, 4
        %v444 = vrot.slane %v417, 4
        %v445 = vrot.slane %v419, 4
        %v446 = vrot.slane %v421, 4
        %v447 = vrot.slane %v423, 4
        %v448 = vrot.slane %v425, 4
        %v449 = vrot.slane %v427, 4
        %v450 = vrot.slane %v429, 4
        %v451 = vrot.slane %v431, 4
        %v452 = vrot.slane %v433, 4
        %v453 = vrot.slane %v435, 4
        %v454 = vrot.slane %v437, 4
        %v455 = vrot.slane %v439, 4
        %v456 = vsel %vm342, %v440, %v441
        %vm457 = vcmask 1031168
        %v458 = vsel %vm457, %v409, %v456
        %v459 = vsel %vm342, %v442, %v443
        %v460 = vsel %vm457, %v413, %v459
        %v461 = vsel %vm342, %v444, %v445
        %v462 = vsel %vm457, %v417, %v461
        %v463 = vsel %vm342, %v446, %v447
        %v464 = vsel %vm457, %v421, %v463
        %v465 = vsel %vm342, %v448, %v449
        %v466 = vsel %vm457, %v425, %v465
        %v467 = vsel %vm342, %v450, %v451
        %v468 = vsel %vm457, %v429, %v467
        %v469 = vsel %vm342, %v452, %v453
        %v470 = vsel %vm457, %v433, %v469
        %v471 = vsel %vm342, %v454, %v455
        %v472 = vsel %vm457, %v437, %v471
        %481 = vst [vmem:[#allocation2 + $0x80] sm:$0xff] %v458
        %482 = vst [vmem:[#allocation2 + $0x88] sm:$0xff] %v460
        %483 = vst [vmem:[#allocation2 + $0x90] sm:$0xff] %v462
        %484 = vst [vmem:[#allocation2 + $0x98] sm:$0xff] %v464
        %485 = vst [vmem:[#allocation2 + $0xa0] sm:$0xff] %v466
        %486 = vst [vmem:[#allocation2 + $0xa8] sm:$0xff] %v468
        %487 = vst [vmem:[#allocation2 + $0xb0] sm:$0xff] %v470
        %488 = vst [vmem:[#allocation2 + $0xb8] sm:$0xff] %v472
        %v489 = vld [vmem:[%s215] sm:$0xff]
        %v490 = vld [vmem:[%s215 + $0x8] sm:$0xf]
        %v491 = vld [vmem:[%s215 + $0xc] sm:$0xff]
        %v492 = vld [vmem:[%s215 + $0x14] sm:$0xf]
        %v493 = vld [vmem:[%s215 + $0x18] sm:$0xff]
        %v494 = vld [vmem:[%s215 + $0x20] sm:$0xf]
        %v495 = vld [vmem:[%s215 + $0x24] sm:$0xff]
        %v496 = vld [vmem:[%s215 + $0x2c] sm:$0xf]
        %v497 = vld [vmem:[%s215 + $0x30] sm:$0xff]
        %v498 = vld [vmem:[%s215 + $0x38] sm:$0xf]
        %v499 = vld [vmem:[%s215 + $0x3c] sm:$0xff]
        %v500 = vld [vmem:[%s215 + $0x44] sm:$0xf]
        %v501 = vld [vmem:[%s215 + $0x48] sm:$0xff]
        %v502 = vld [vmem:[%s215 + $0x50] sm:$0xf]
        %v503 = vld [vmem:[%s215 + $0x54] sm:$0xff]
        %v504 = vld [vmem:[%s215 + $0x5c] sm:$0xf]
        %521 = vrot.lane.b32.xlu0 %v489, 125
        %v522 = vpop.permute.xlu0 %521
        %523 = vrot.lane.b32.xlu0 %v490, 125
        %v524 = vpop.permute.xlu0 %523
        %525 = vrot.lane.b32.xlu0 %v491, 125
        %v526 = vpop.permute.xlu0 %525
        %527 = vrot.lane.b32.xlu0 %v492, 125
        %v528 = vpop.permute.xlu0 %527
        %529 = vrot.lane.b32.xlu0 %v493, 125
        %v530 = vpop.permute.xlu0 %529
        %531 = vrot.lane.b32.xlu0 %v494, 125
        %v532 = vpop.permute.xlu0 %531
        %533 = vrot.lane.b32.xlu0 %v495, 125
        %v534 = vpop.permute.xlu0 %533
        %535 = vrot.lane.b32.xlu0 %v496, 125
        %v536 = vpop.permute.xlu0 %535
        %537 = vrot.lane.b32.xlu0 %v497, 125
        %v538 = vpop.permute.xlu0 %537
        %539 = vrot.lane.b32.xlu0 %v498, 125
        %v540 = vpop.permute.xlu0 %539
        %541 = vrot.lane.b32.xlu0 %v499, 125
        %v542 = vpop.permute.xlu0 %541
        %543 = vrot.lane.b32.xlu0 %v500, 125
        %v544 = vpop.permute.xlu0 %543
        %545 = vrot.lane.b32.xlu0 %v501, 125
        %v546 = vpop.permute.xlu0 %545
        %547 = vrot.lane.b32.xlu0 %v502, 125
        %v548 = vpop.permute.xlu0 %547
        %549 = vrot.lane.b32.xlu0 %v503, 125
        %v550 = vpop.permute.xlu0 %549
        %551 = vrot.lane.b32.xlu0 %v504, 125
        %v552 = vpop.permute.xlu0 %551
        %v553 = vrot.slane %v522, 4
        %v554 = vrot.slane %v524, 4
        %v555 = vrot.slane %v526, 4
        %v556 = vrot.slane %v528, 4
        %v557 = vrot.slane %v530, 4
        %v558 = vrot.slane %v532, 4
        %v559 = vrot.slane %v534, 4
        %v560 = vrot.slane %v536, 4
        %v561 = vrot.slane %v538, 4
        %v562 = vrot.slane %v540, 4
        %v563 = vrot.slane %v542, 4
        %v564 = vrot.slane %v544, 4
        %v565 = vrot.slane %v546, 4
        %v566 = vrot.slane %v548, 4
        %v567 = vrot.slane %v550, 4
        %v568 = vrot.slane %v552, 4
        %v569 = vsel %vm342, %v553, %v554
        %vm570 = vcmask 1022976
        %v571 = vsel %vm570, %v522, %v569
        %v572 = vsel %vm342, %v555, %v556
        %v573 = vsel %vm570, %v526, %v572
        %v574 = vsel %vm342, %v557, %v558
        %v575 = vsel %vm570, %v530, %v574
        %v576 = vsel %vm342, %v559, %v560
        %v577 = vsel %vm570, %v534, %v576
        %v578 = vsel %vm342, %v561, %v562
        %v579 = vsel %vm570, %v538, %v578
        %v580 = vsel %vm342, %v563, %v564
        %v581 = vsel %vm570, %v542, %v580
        %v582 = vsel %vm342, %v565, %v566
        %v583 = vsel %vm570, %v546, %v582
        %v584 = vsel %vm342, %v567, %v568
        %v585 = vsel %vm570, %v550, %v584
        %594 = vst [vmem:[#allocation2 + $0xc0] sm:$0xff] %v571
        %595 = vst [vmem:[#allocation2 + $0xc8] sm:$0xff] %v573
        %596 = vst [vmem:[#allocation2 + $0xd0] sm:$0xff] %v575
        %597 = vst [vmem:[#allocation2 + $0xd8] sm:$0xff] %v577
        %598 = vst [vmem:[#allocation2 + $0xe0] sm:$0xff] %v579
        %599 = vst [vmem:[#allocation2 + $0xe8] sm:$0xff] %v581
        %600 = vst [vmem:[#allocation2 + $0xf0] sm:$0xff] %v583
        %601 = vst [vmem:[#allocation2 + $0xf8] sm:$0xff] %v585
        %v602 = vld [vmem:[#allocation8] sm:$0xff]
        %v603 = vld [vmem:[#allocation8 + $0x8] sm:$0xff]
        %v604 = vld [vmem:[#allocation8 + $0x10] sm:$0xff]
        %v605 = vld [vmem:[#allocation8 + $0x18] sm:$0xff]
        %v606 = vld [vmem:[#allocation8 + $0x20] sm:$0xff]
        %v607 = vld [vmem:[#allocation8 + $0x28] sm:$0xff]
        %v608 = vld [vmem:[#allocation8 + $0x30] sm:$0xff]
        %v609 = vld [vmem:[#allocation8 + $0x38] sm:$0xff]
        %v610 = vld [vmem:[#allocation8 + $0x40] sm:$0xff]
        %v611 = vld [vmem:[#allocation8 + $0x48] sm:$0xff]
        %v612 = vld [vmem:[#allocation8 + $0x50] sm:$0xff]
        %v613 = vld [vmem:[#allocation8 + $0x58] sm:$0xff]
        %v614 = vld [vmem:[#allocation8 + $0x60] sm:$0xff]
        %v615 = vld [vmem:[#allocation8 + $0x68] sm:$0xff]
        %v616 = vld [vmem:[#allocation8 + $0x70] sm:$0xff]
        %v617 = vld [vmem:[#allocation8 + $0x78] sm:$0xff]
        %v618 = vld [vmem:[#allocation8 + $0x80] sm:$0xff]
        %v619 = vld [vmem:[#allocation8 + $0x88] sm:$0xff]
        %v620 = vld [vmem:[#allocation8 + $0x90] sm:$0xff]
        %v621 = vld [vmem:[#allocation8 + $0x98] sm:$0xff]
        %v622 = vld [vmem:[#allocation8 + $0xa0] sm:$0xff]
        %v623 = vld [vmem:[#allocation8 + $0xa8] sm:$0xff]
        %v624 = vld [vmem:[#allocation8 + $0xb0] sm:$0xff]
        %v625 = vld [vmem:[#allocation8 + $0xb8] sm:$0xff]
        %v626 = vld [vmem:[#allocation8 + $0xc0] sm:$0xff]
        %v627 = vld [vmem:[#allocation8 + $0xc8] sm:$0xff]
        %v628 = vld [vmem:[#allocation8 + $0xd0] sm:$0xff]
        %v629 = vld [vmem:[#allocation8 + $0xd8] sm:$0xff]
        %v630 = vld [vmem:[#allocation8 + $0xe0] sm:$0xff]
        %v631 = vld [vmem:[#allocation8 + $0xe8] sm:$0xff]
        %v632 = vld [vmem:[#allocation8 + $0xf0] sm:$0xff]
        %v633 = vld [vmem:[#allocation8 + $0xf8] sm:$0xff]
        %v634 = vld [vmem:[#allocation8 + $0x100] sm:$0xff]
        %v635 = vld [vmem:[#allocation8 + $0x108] sm:$0xff]
        %v636 = vld [vmem:[#allocation2] sm:$0xff]
        %v637 = vld [vmem:[#allocation2 + $0x8] sm:$0xff]
        %v638 = vld [vmem:[#allocation2 + $0x10] sm:$0xff]
        %v639 = vld [vmem:[#allocation2 + $0x18] sm:$0xff]
        %v640 = vld [vmem:[#allocation2 + $0x20] sm:$0xff]
        %v641 = vld [vmem:[#allocation2 + $0x28] sm:$0xff]
        %v642 = vld [vmem:[#allocation2 + $0x30] sm:$0xff]
        %v643 = vld [vmem:[#allocation2 + $0x38] sm:$0xff]
        %v644 = vld [vmem:[#allocation2 + $0x40] sm:$0xff]
        %v645 = vld [vmem:[#allocation2 + $0x48] sm:$0xff]
        %v646 = vld [vmem:[#allocation2 + $0x50] sm:$0xff]
        %v647 = vld [vmem:[#allocation2 + $0x58] sm:$0xff]
        %v648 = vld [vmem:[#allocation2 + $0x60] sm:$0xff]
        %v649 = vld [vmem:[#allocation2 + $0x68] sm:$0xff]
        %v650 = vld [vmem:[#allocation2 + $0x70] sm:$0xff]
        %v651 = vld [vmem:[#allocation2 + $0x78] sm:$0xff]
        %v652 = vld [vmem:[#allocation2 + $0x80] sm:$0xff]
        %v653 = vld [vmem:[#allocation2 + $0x88] sm:$0xff]
        %v654 = vld [vmem:[#allocation2 + $0x90] sm:$0xff]
        %v655 = vld [vmem:[#allocation2 + $0x98] sm:$0xff]
        %v656 = vld [vmem:[#allocation2 + $0xa0] sm:$0xff]
        %v657 = vld [vmem:[#allocation2 + $0xa8] sm:$0xff]
        %v658 = vld [vmem:[#allocation2 + $0xb0] sm:$0xff]
        %v659 = vld [vmem:[#allocation2 + $0xb8] sm:$0xff]
        %v660 = vld [vmem:[#allocation2 + $0xc0] sm:$0xff]
        %v661 = vld [vmem:[#allocation2 + $0xc8] sm:$0xff]
        %v662 = vld [vmem:[#allocation2 + $0xd0] sm:$0xff]
        %v663 = vld [vmem:[#allocation2 + $0xd8] sm:$0xff]
        %v664 = vld [vmem:[#allocation2 + $0xe0] sm:$0xff]
        %v665 = vld [vmem:[#allocation2 + $0xe8] sm:$0xff]
        %v666 = vld [vmem:[#allocation2 + $0xf0] sm:$0xff]
        %v667 = vld [vmem:[#allocation2 + $0xf8] sm:$0xff]
        %v702 = vunpack.c.l.b16 %v602
        %v703 = vunpack.c.h.b16 %v602
        %v704 = vunpack.c.l.b16 %v603
        %v705 = vunpack.c.h.b16 %v603
        %v706 = vunpack.c.l.b16 %v604
        %v707 = vunpack.c.h.b16 %v604
        %v708 = vunpack.c.l.b16 %v605
        %v709 = vunpack.c.h.b16 %v605
        %v710 = vunpack.c.l.b16 %v606
        %v711 = vunpack.c.h.b16 %v606
        %v712 = vunpack.c.l.b16 %v607
        %v713 = vunpack.c.h.b16 %v607
        %v714 = vunpack.c.l.b16 %v608
        %v715 = vunpack.c.h.b16 %v608
        %v716 = vunpack.c.l.b16 %v609
        %v717 = vunpack.c.h.b16 %v609
        %v718 = vunpack.c.l.b16 %v610
        %v719 = vunpack.c.h.b16 %v610
        %v720 = vunpack.c.l.b16 %v611
        %v721 = vunpack.c.h.b16 %v611
        %v722 = vunpack.c.l.b16 %v612
        %v723 = vunpack.c.h.b16 %v612
        %v724 = vunpack.c.l.b16 %v613
        %v725 = vunpack.c.h.b16 %v613
        %v726 = vunpack.c.l.b16 %v614
        %v727 = vunpack.c.h.b16 %v614
        %v728 = vunpack.c.l.b16 %v615
        %v729 = vunpack.c.h.b16 %v615
        %v730 = vunpack.c.l.b16 %v616
        %v731 = vunpack.c.h.b16 %v616
        %v732 = vunpack.c.l.b16 %v617
        %v733 = vunpack.c.h.b16 %v617
        %v734 = vunpack.c.l.b16 %v618
        %v735 = vunpack.c.h.b16 %v618
        %v736 = vunpack.c.l.b16 %v619
        %v737 = vunpack.c.h.b16 %v619
        %v738 = vunpack.c.l.b16 %v620
        %v739 = vunpack.c.h.b16 %v620
        %v740 = vunpack.c.l.b16 %v621
        %v741 = vunpack.c.h.b16 %v621
        %v742 = vunpack.c.l.b16 %v622
        %v743 = vunpack.c.h.b16 %v622
        %v744 = vunpack.c.l.b16 %v623
        %v745 = vunpack.c.h.b16 %v623
        %v746 = vunpack.c.l.b16 %v624
        %v747 = vunpack.c.h.b16 %v624
        %v748 = vunpack.c.l.b16 %v625
        %v749 = vunpack.c.h.b16 %v625
        %v750 = vunpack.c.l.b16 %v626
        %v751 = vunpack.c.h.b16 %v626
        %v752 = vunpack.c.l.b16 %v627
        %v753 = vunpack.c.h.b16 %v627
        %v754 = vunpack.c.l.b16 %v628
        %v755 = vunpack.c.h.b16 %v628
        %v756 = vunpack.c.l.b16 %v629
        %v757 = vunpack.c.h.b16 %v629
        %v758 = vunpack.c.l.b16 %v630
        %v759 = vunpack.c.h.b16 %v630
        %v760 = vunpack.c.l.b16 %v631
        %v761 = vunpack.c.h.b16 %v631
        %v762 = vunpack.c.l.b16 %v632
        %v763 = vunpack.c.h.b16 %v632
        %v764 = vunpack.c.l.b16 %v633
        %v765 = vunpack.c.h.b16 %v633
        %v766 = vunpack.c.l.b16 %v634
        %v767 = vunpack.c.h.b16 %v634
        %v768 = vunpack.c.l.b16 %v635
        %v769 = vunpack.c.h.b16 %v635
        %v770 = vpack.c.b16 %v704, %v702
        %v771 = vpack.c.b16 %v705, %v703
        %v772 = vpack.c.b16 %v708, %v706
        %v773 = vpack.c.b16 %v709, %v707
        %v774 = vpack.c.b16 %v712, %v710
        %v775 = vpack.c.b16 %v713, %v711
        %v776 = vpack.c.b16 %v716, %v714
        %v777 = vpack.c.b16 %v717, %v715
        %v778 = vpack.c.b16 %v720, %v718
        %v779 = vpack.c.b16 %v721, %v719
        %v780 = vpack.c.b16 %v724, %v722
        %v781 = vpack.c.b16 %v725, %v723
        %v782 = vpack.c.b16 %v728, %v726
        %v783 = vpack.c.b16 %v729, %v727
        %v784 = vpack.c.b16 %v732, %v730
        %v785 = vpack.c.b16 %v733, %v731
        %v786 = vpack.c.b16 %v736, %v734
        %v787 = vpack.c.b16 %v737, %v735
        %v788 = vpack.c.b16 %v740, %v738
        %v789 = vpack.c.b16 %v741, %v739
        %v790 = vpack.c.b16 %v744, %v742
        %v791 = vpack.c.b16 %v745, %v743
        %v792 = vpack.c.b16 %v748, %v746
        %v793 = vpack.c.b16 %v749, %v747
        %v794 = vpack.c.b16 %v752, %v750
        %v795 = vpack.c.b16 %v753, %v751
        %v796 = vpack.c.b16 %v756, %v754
        %v797 = vpack.c.b16 %v757, %v755
        %v798 = vpack.c.b16 %v760, %v758
        %v799 = vpack.c.b16 %v761, %v759
        %v800 = vpack.c.b16 %v764, %v762
        %v801 = vpack.c.b16 %v765, %v763
        %v802 = vpack.c.b16 %v768, %v766
        %v803 = vpack.c.b16 %v769, %v767
        %v870 = vunpack.c.l.b16 %v636
        %v871 = vunpack.c.h.b16 %v636
        %v872 = vunpack.c.l.b16 %v637
        %v873 = vunpack.c.h.b16 %v637
        %v874 = vunpack.c.l.b16 %v638
        %v875 = vunpack.c.h.b16 %v638
        %v876 = vunpack.c.l.b16 %v639
        %v877 = vunpack.c.h.b16 %v639
        %v878 = vunpack.c.l.b16 %v640
        %v879 = vunpack.c.h.b16 %v640
        %v880 = vunpack.c.l.b16 %v641
        %v881 = vunpack.c.h.b16 %v641
        %v882 = vunpack.c.l.b16 %v642
        %v883 = vunpack.c.h.b16 %v642
        %v884 = vunpack.c.l.b16 %v643
        %v885 = vunpack.c.h.b16 %v643
        %v886 = vunpack.c.l.b16 %v644
        %v887 = vunpack.c.h.b16 %v644
        %v888 = vunpack.c.l.b16 %v645
        %v889 = vunpack.c.h.b16 %v645
        %v890 = vunpack.c.l.b16 %v646
        %v891 = vunpack.c.h.b16 %v646
        %v892 = vunpack.c.l.b16 %v647
        %v893 = vunpack.c.h.b16 %v647
        %v894 = vunpack.c.l.b16 %v648
        %v895 = vunpack.c.h.b16 %v648
        %v896 = vunpack.c.l.b16 %v649
        %v897 = vunpack.c.h.b16 %v649
        %v898 = vunpack.c.l.b16 %v650
        %v899 = vunpack.c.h.b16 %v650
        %v900 = vunpack.c.l.b16 %v651
        %v901 = vunpack.c.h.b16 %v651
        %v902 = vunpack.c.l.b16 %v652
        %v903 = vunpack.c.h.b16 %v652
        %v904 = vunpack.c.l.b16 %v653
        %v905 = vunpack.c.h.b16 %v653
        %v906 = vunpack.c.l.b16 %v654
        %v907 = vunpack.c.h.b16 %v654
        %v908 = vunpack.c.l.b16 %v655
        %v909 = vunpack.c.h.b16 %v655
        %v910 = vunpack.c.l.b16 %v656
        %v911 = vunpack.c.h.b16 %v656
        %v912 = vunpack.c.l.b16 %v657
        %v913 = vunpack.c.h.b16 %v657
        %v914 = vunpack.c.l.b16 %v658
        %v915 = vunpack.c.h.b16 %v658
        %v916 = vunpack.c.l.b16 %v659
        %v917 = vunpack.c.h.b16 %v659
        %v918 = vunpack.c.l.b16 %v660
        %v919 = vunpack.c.h.b16 %v660
        %v920 = vunpack.c.l.b16 %v661
        %v921 = vunpack.c.h.b16 %v661
        %v922 = vunpack.c.l.b16 %v662
        %v923 = vunpack.c.h.b16 %v662
        %v924 = vunpack.c.l.b16 %v663
        %v925 = vunpack.c.h.b16 %v663
        %v926 = vunpack.c.l.b16 %v664
        %v927 = vunpack.c.h.b16 %v664
        %v928 = vunpack.c.l.b16 %v665
        %v929 = vunpack.c.h.b16 %v665
        %v930 = vunpack.c.l.b16 %v666
        %v931 = vunpack.c.h.b16 %v666
        %v932 = vunpack.c.l.b16 %v667
        %v933 = vunpack.c.h.b16 %v667
        %v934 = vpack.c.b16 %v872, %v870
        %v935 = vpack.c.b16 %v873, %v871
        %v936 = vpack.c.b16 %v876, %v874
        %v937 = vpack.c.b16 %v877, %v875
        %v938 = vpack.c.b16 %v880, %v878
        %v939 = vpack.c.b16 %v881, %v879
        %v940 = vpack.c.b16 %v884, %v882
        %v941 = vpack.c.b16 %v885, %v883
        %v942 = vpack.c.b16 %v888, %v886
        %v943 = vpack.c.b16 %v889, %v887
        %v944 = vpack.c.b16 %v892, %v890
        %v945 = vpack.c.b16 %v893, %v891
        %v946 = vpack.c.b16 %v896, %v894
        %v947 = vpack.c.b16 %v897, %v895
        %v948 = vpack.c.b16 %v900, %v898
        %v949 = vpack.c.b16 %v901, %v899
        %v950 = vpack.c.b16 %v904, %v902
        %v951 = vpack.c.b16 %v905, %v903
        %v952 = vpack.c.b16 %v908, %v906
        %v953 = vpack.c.b16 %v909, %v907
        %v954 = vpack.c.b16 %v912, %v910
        %v955 = vpack.c.b16 %v913, %v911
        %v956 = vpack.c.b16 %v916, %v914
        %v957 = vpack.c.b16 %v917, %v915
        %v958 = vpack.c.b16 %v920, %v918
        %v959 = vpack.c.b16 %v921, %v919
        %v960 = vpack.c.b16 %v924, %v922
        %v961 = vpack.c.b16 %v925, %v923
        %v962 = vpack.c.b16 %v928, %v926
        %v963 = vpack.c.b16 %v929, %v927
        %v964 = vpack.c.b16 %v932, %v930
        %v965 = vpack.c.b16 %v933, %v931
        %998 = vmatprep.subr.bf16.mxu0 %v949
        %999 = vmatpush1.bf16.msra.mxu0 %v948
        %1000 = vmatprep.subr.bf16.mxu0 %v947
        %1001 = vmatpush1.bf16.msra.mxu0 %v946
        %1002 = vmatprep.subr.bf16.mxu0 %v945
        %1003 = vmatpush1.bf16.msra.mxu0 %v944
        %1004 = vmatprep.subr.bf16.mxu0 %v943
        %1005 = vmatpush1.bf16.msra.mxu0 %v942
        %1006 = vmatprep.subr.bf16.mxu0 %v941
        %1007 = vmatpush1.bf16.msra.mxu0 %v940
        %1008 = vmatprep.subr.bf16.mxu0 %v939
        %1009 = vmatpush1.bf16.msra.mxu0 %v938
        %1010 = vmatprep.subr.bf16.mxu0 %v937
        %1011 = vmatpush1.bf16.msra.mxu0 %v936
        %1012 = vmatprep.subr.bf16.mxu0 %v935
        %1013 = vmatpush1.bf16.msra.mxu0 %v934
        %1014 = vmatprep.subr.bf16.mxu0 %v965
        %1015 = vmatpush2.bf16.msra.mxu0 %v964
        %1016 = vmatprep.subr.bf16.mxu0 %v963
        %1017 = vmatpush2.bf16.msra.mxu0 %v962
        %1018 = vmatprep.subr.bf16.mxu0 %v961
        %1019 = vmatpush2.bf16.msra.mxu0 %v960
        %1020 = vmatprep.subr.bf16.mxu0 %v959
        %1021 = vmatpush2.bf16.msra.mxu0 %v958
        %1022 = vmatprep.subr.bf16.mxu0 %v957
        %1023 = vmatpush2.bf16.msra.mxu0 %v956
        %1024 = vmatprep.subr.bf16.mxu0 %v955
        %1025 = vmatpush2.bf16.msra.mxu0 %v954
        %1026 = vmatprep.subr.bf16.mxu0 %v953
        %1027 = vmatpush2.bf16.msra.mxu0 %v952
        %1028 = vmatprep.subr.bf16.mxu0 %v951
        %1029 = vmatpush2.bf16.msra.mxu0 %v950
        %1030 = vmatprep.mubr.bf16.mxu0 %v771
        %1031 = vmatmul.mubr.bf16.gmra.mxu0 %v770
        %v1032 = vpop.f32.mrf.mxu0
        %v1033 = vadd.f32 0.0, %v1032
        %v1034 = vpop.f32.mrf.mxu0
        %v1035 = vadd.f32 0.0, %v1034
        %v1036 = vpop.f32.mrf.mxu0
        %v1037 = vadd.f32 0.0, %v1036
        %v1038 = vpop.f32.mrf.mxu0
        %v1039 = vadd.f32 0.0, %v1038
        %1040 = vmatprep.mubr.bf16.mxu0 %v773
        %1041 = vmatmul.mubr.bf16.gmra.mxu0 %v772
        %v1042 = vpop.f32.mrf.mxu0
        %v1043 = vadd.f32 0.0, %v1042
        %v1044 = vpop.f32.mrf.mxu0
        %v1045 = vadd.f32 0.0, %v1044
        %v1046 = vpop.f32.mrf.mxu0
        %v1047 = vadd.f32 0.0, %v1046
        %v1048 = vpop.f32.mrf.mxu0
        %v1049 = vadd.f32 0.0, %v1048
        %1050 = vmatprep.mubr.bf16.mxu0 %v775
        %1051 = vmatmul.mubr.bf16.gmra.mxu0 %v774
        %v1052 = vpop.f32.mrf.mxu0
        %v1053 = vadd.f32 0.0, %v1052
        %v1054 = vpop.f32.mrf.mxu0
        %v1055 = vadd.f32 0.0, %v1054
        %v1056 = vpop.f32.mrf.mxu0
        %v1057 = vadd.f32 0.0, %v1056
        %v1058 = vpop.f32.mrf.mxu0
        %v1059 = vadd.f32 0.0, %v1058
        %1060 = vmatprep.mubr.bf16.mxu0 %v777
        %1061 = vmatmul.mubr.bf16.gmra.mxu0 %v776
        %v1062 = vpop.f32.mrf.mxu0
        %v1063 = vadd.f32 0.0, %v1062
        %v1064 = vpop.f32.mrf.mxu0
        %v1065 = vadd.f32 0.0, %v1064
        %v1066 = vpop.f32.mrf.mxu0
        %v1067 = vadd.f32 0.0, %v1066
        %v1068 = vpop.f32.mrf.mxu0
        %v1069 = vadd.f32 0.0, %v1068
        %1070 = vmatprep.mubr.bf16.mxu0 %v779
        %1071 = vmatmul.mubr.bf16.gmra.mxu0 %v778
        %v1072 = vpop.f32.mrf.mxu0
        %v1073 = vadd.f32 0.0, %v1072
        %v1074 = vpop.f32.mrf.mxu0
        %v1075 = vadd.f32 0.0, %v1074
        %v1076 = vpop.f32.mrf.mxu0
        %v1077 = vadd.f32 0.0, %v1076
        %v1078 = vpop.f32.mrf.mxu0
        %v1079 = vadd.f32 0.0, %v1078
        %1080 = vmatprep.mubr.bf16.mxu0 %v781
        %1081 = vmatmul.mubr.bf16.gmra.mxu0 %v780
        %v1082 = vpop.f32.mrf.mxu0
        %v1083 = vadd.f32 0.0, %v1082
        %v1084 = vpop.f32.mrf.mxu0
        %v1085 = vadd.f32 0.0, %v1084
        %v1086 = vpop.f32.mrf.mxu0
        %v1087 = vadd.f32 0.0, %v1086
        %v1088 = vpop.f32.mrf.mxu0
        %v1089 = vadd.f32 0.0, %v1088
        %1090 = vmatprep.mubr.bf16.mxu0 %v783
        %1091 = vmatmul.mubr.bf16.gmra.mxu0 %v782
        %v1092 = vpop.f32.mrf.mxu0
        %v1093 = vadd.f32 0.0, %v1092
        %v1094 = vpop.f32.mrf.mxu0
        %v1095 = vadd.f32 0.0, %v1094
        %v1096 = vpop.f32.mrf.mxu0
        %v1097 = vadd.f32 0.0, %v1096
        %v1098 = vpop.f32.mrf.mxu0
        %v1099 = vadd.f32 0.0, %v1098
        %1100 = vmatprep.mubr.bf16.mxu0 %v785
        %1101 = vmatmul.mubr.bf16.gmra.mxu0 %v784
        %v1102 = vpop.f32.mrf.mxu0
        %v1103 = vadd.f32 0.0, %v1102
        %v1104 = vpop.f32.mrf.mxu0
        %v1105 = vadd.f32 0.0, %v1104
        %v1106 = vpop.f32.mrf.mxu0
        %v1107 = vadd.f32 0.0, %v1106
        %v1108 = vpop.f32.mrf.mxu0
        %v1109 = vadd.f32 0.0, %v1108
        %1110 = vmatprep.mubr.bf16.mxu0 %v787
        %1111 = vmatmul.mubr.bf16.gmra.mxu0 %v786
        %v1112 = vpop.f32.mrf.mxu0
        %v1113 = vadd.f32 0.0, %v1112
        %v1114 = vpop.f32.mrf.mxu0
        %v1115 = vadd.f32 0.0, %v1114
        %v1116 = vpop.f32.mrf.mxu0
        %v1117 = vadd.f32 0.0, %v1116
        %v1118 = vpop.f32.mrf.mxu0
        %v1119 = vadd.f32 0.0, %v1118
        %1120 = vmatprep.mubr.bf16.mxu0 %v789
        %1121 = vmatmul.mubr.bf16.gmra.mxu0 %v788
        %v1122 = vpop.f32.mrf.mxu0
        %v1123 = vadd.f32 0.0, %v1122
        %v1124 = vpop.f32.mrf.mxu0
        %v1125 = vadd.f32 0.0, %v1124
        %v1126 = vpop.f32.mrf.mxu0
        %v1127 = vadd.f32 0.0, %v1126
        %v1128 = vpop.f32.mrf.mxu0
        %v1129 = vadd.f32 0.0, %v1128
        %1130 = vmatprep.mubr.bf16.mxu0 %v791
        %1131 = vmatmul.mubr.bf16.gmra.mxu0 %v790
        %v1132 = vpop.f32.mrf.mxu0
        %v1133 = vadd.f32 0.0, %v1132
        %v1134 = vpop.f32.mrf.mxu0
        %v1135 = vadd.f32 0.0, %v1134
        %v1136 = vpop.f32.mrf.mxu0
        %v1137 = vadd.f32 0.0, %v1136
        %v1138 = vpop.f32.mrf.mxu0
        %v1139 = vadd.f32 0.0, %v1138
        %1140 = vmatprep.mubr.bf16.mxu0 %v793
        %1141 = vmatmul.mubr.bf16.gmra.mxu0 %v792
        %v1142 = vpop.f32.mrf.mxu0
        %v1143 = vadd.f32 0.0, %v1142
        %v1144 = vpop.f32.mrf.mxu0
        %v1145 = vadd.f32 0.0, %v1144
        %v1146 = vpop.f32.mrf.mxu0
        %v1147 = vadd.f32 0.0, %v1146
        %v1148 = vpop.f32.mrf.mxu0
        %v1149 = vadd.f32 0.0, %v1148
        %1150 = vmatprep.mubr.bf16.mxu0 %v795
        %1151 = vmatmul.mubr.bf16.gmra.mxu0 %v794
        %v1152 = vpop.f32.mrf.mxu0
        %v1153 = vadd.f32 0.0, %v1152
        %v1154 = vpop.f32.mrf.mxu0
        %v1155 = vadd.f32 0.0, %v1154
        %v1156 = vpop.f32.mrf.mxu0
        %v1157 = vadd.f32 0.0, %v1156
        %v1158 = vpop.f32.mrf.mxu0
        %v1159 = vadd.f32 0.0, %v1158
        %1160 = vmatprep.mubr.bf16.mxu0 %v797
        %1161 = vmatmul.mubr.bf16.gmra.mxu0 %v796
        %v1162 = vpop.f32.mrf.mxu0
        %v1163 = vadd.f32 0.0, %v1162
        %v1164 = vpop.f32.mrf.mxu0
        %v1165 = vadd.f32 0.0, %v1164
        %v1166 = vpop.f32.mrf.mxu0
        %v1167 = vadd.f32 0.0, %v1166
        %v1168 = vpop.f32.mrf.mxu0
        %v1169 = vadd.f32 0.0, %v1168
        %1170 = vmatprep.mubr.bf16.mxu0 %v799
        %1171 = vmatmul.mubr.bf16.gmra.mxu0 %v798
        %v1172 = vpop.f32.mrf.mxu0
        %v1173 = vadd.f32 0.0, %v1172
        %v1174 = vpop.f32.mrf.mxu0
        %v1175 = vadd.f32 0.0, %v1174
        %v1176 = vpop.f32.mrf.mxu0
        %v1177 = vadd.f32 0.0, %v1176
        %v1178 = vpop.f32.mrf.mxu0
        %v1179 = vadd.f32 0.0, %v1178
        %1180 = vmatprep.mubr.bf16.mxu0 %v801
        %1181 = vmatmul.mubr.bf16.gmra.mxu0 %v800
        %v1182 = vpop.f32.mrf.mxu0
        %v1183 = vadd.f32 0.0, %v1182
        %v1184 = vpop.f32.mrf.mxu0
        %v1185 = vadd.f32 0.0, %v1184
        %v1186 = vpop.f32.mrf.mxu0
        %v1187 = vadd.f32 0.0, %v1186
        %v1188 = vpop.f32.mrf.mxu0
        %v1189 = vadd.f32 0.0, %v1188
        %1190 = vmatprep.mubr.bf16.mxu0 %v803
        %1191 = vmatmul.mubr.bf16.gmra.mxu0 %v802
        %v1192 = vpop.f32.mrf.mxu0
        %v1193 = vadd.f32 0.0, %v1192
        %v1194 = vpop.f32.mrf.mxu0
        %v1195 = vadd.f32 0.0, %v1194
        %v1196 = vpop.f32.mrf.mxu0
        %v1197 = vadd.f32 0.0, %v1196
        %v1198 = vpop.f32.mrf.mxu0
        %v1199 = vadd.f32 0.0, %v1198
        %1200 = vdwg.mxu0
        %v1201 = vmul.f32 %v1033, %v1033
        %v1202 = vmul.f32 %v1035, %v1035
        %v1203 = vmul.f32 %v1037, %v1037
        %v1204 = vmul.f32 %v1039, %v1039
        %v1205 = vmul.f32 %v1043, %v1043
        %v1206 = vmul.f32 %v1045, %v1045
        %v1207 = vmul.f32 %v1047, %v1047
        %v1208 = vmul.f32 %v1049, %v1049
        %v1209 = vmul.f32 %v1053, %v1053
        %v1210 = vmul.f32 %v1055, %v1055
        %v1211 = vmul.f32 %v1057, %v1057
        %v1212 = vmul.f32 %v1059, %v1059
        %v1213 = vmul.f32 %v1063, %v1063
        %v1214 = vmul.f32 %v1065, %v1065
        %v1215 = vmul.f32 %v1067, %v1067
        %v1216 = vmul.f32 %v1069, %v1069
        %v1217 = vmul.f32 %v1073, %v1073
        %v1218 = vmul.f32 %v1075, %v1075
        %v1219 = vmul.f32 %v1077, %v1077
        %v1220 = vmul.f32 %v1079, %v1079
        %v1221 = vmul.f32 %v1083, %v1083
        %v1222 = vmul.f32 %v1085, %v1085
        %v1223 = vmul.f32 %v1087, %v1087
        %v1224 = vmul.f32 %v1089, %v1089
        %v1225 = vmul.f32 %v1093, %v1093
        %v1226 = vmul.f32 %v1095, %v1095
        %v1227 = vmul.f32 %v1097, %v1097
        %v1228 = vmul.f32 %v1099, %v1099
        %v1229 = vmul.f32 %v1103, %v1103
        %v1230 = vmul.f32 %v1105, %v1105
        %v1231 = vmul.f32 %v1107, %v1107
        %v1232 = vmul.f32 %v1109, %v1109
        %v1233 = vmul.f32 %v1113, %v1113
        %v1234 = vmul.f32 %v1115, %v1115
        %v1235 = vmul.f32 %v1117, %v1117
        %v1236 = vmul.f32 %v1119, %v1119
        %v1237 = vmul.f32 %v1123, %v1123
        %v1238 = vmul.f32 %v1125, %v1125
        %v1239 = vmul.f32 %v1127, %v1127
        %v1240 = vmul.f32 %v1129, %v1129
        %v1241 = vmul.f32 %v1133, %v1133
        %v1242 = vmul.f32 %v1135, %v1135
        %v1243 = vmul.f32 %v1137, %v1137
        %v1244 = vmul.f32 %v1139, %v1139
        %v1245 = vmul.f32 %v1143, %v1143
        %v1246 = vmul.f32 %v1145, %v1145
        %v1247 = vmul.f32 %v1147, %v1147
        %v1248 = vmul.f32 %v1149, %v1149
        %v1249 = vmul.f32 %v1153, %v1153
        %v1250 = vmul.f32 %v1155, %v1155
        %v1251 = vmul.f32 %v1157, %v1157
        %v1252 = vmul.f32 %v1159, %v1159
        %v1253 = vmul.f32 %v1163, %v1163
        %v1254 = vmul.f32 %v1165, %v1165
        %v1255 = vmul.f32 %v1167, %v1167
        %v1256 = vmul.f32 %v1169, %v1169
        %v1257 = vmul.f32 %v1173, %v1173
        %v1258 = vmul.f32 %v1175, %v1175
        %v1259 = vmul.f32 %v1177, %v1177
        %v1260 = vmul.f32 %v1179, %v1179
        %v1261 = vmul.f32 %v1183, %v1183
        %v1262 = vmul.f32 %v1185, %v1185
        %v1263 = vmul.f32 %v1187, %v1187
        %v1264 = vmul.f32 %v1189, %v1189
        %v1265 = vmul.f32 %v1193, %v1193
        %v1266 = vmul.f32 %v1195, %v1195
        %v1267 = vmul.f32 %v1197, %v1197
        %v1268 = vmul.f32 %v1199, %v1199
        %v1269 = vadd.f32 %v1201, %v1235
        %v1270 = vadd.f32 %v1202, %v1236
        %v1271 = vadd.f32 %v1203, %v1237
        %v1272 = vadd.f32 %v1204, %v1238
        %v1273 = vadd.f32 %v1205, %v1239
        %v1274 = vadd.f32 %v1206, %v1240
        %v1275 = vadd.f32 %v1207, %v1241
        %v1276 = vadd.f32 %v1208, %v1242
        %v1277 = vadd.f32 %v1209, %v1243
        %v1278 = vadd.f32 %v1210, %v1244
        %v1279 = vadd.f32 %v1211, %v1245
        %v1280 = vadd.f32 %v1212, %v1246
        %v1281 = vadd.f32 %v1213, %v1247
        %v1282 = vadd.f32 %v1214, %v1248
        %v1283 = vadd.f32 %v1215, %v1249
        %v1284 = vadd.f32 %v1216, %v1250
        %v1285 = vadd.f32 %v1217, %v1251
        %v1286 = vadd.f32 %v1218, %v1252
        %v1287 = vadd.f32 %v1219, %v1253
        %v1288 = vadd.f32 %v1220, %v1254
        %v1289 = vadd.f32 %v1221, %v1255
        %v1290 = vadd.f32 %v1222, %v1256
        %v1291 = vadd.f32 %v1223, %v1257
        %v1292 = vadd.f32 %v1224, %v1258
        %v1293 = vadd.f32 %v1225, %v1259
        %v1294 = vadd.f32 %v1226, %v1260
        %v1295 = vadd.f32 %v1227, %v1261
        %v1296 = vadd.f32 %v1228, %v1262
        %v1297 = vadd.f32 %v1229, %v1263
        %v1298 = vadd.f32 %v1230, %v1264
        %v1299 = vadd.f32 %v1231, %v1265
        %v1300 = vadd.f32 %v1232, %v1266
        %v1301 = vadd.f32 %v1233, %v1267
        %v1302 = vadd.f32 %v1234, %v1268
        %v1303 = vld [vmem:[%s3] sm:$0xff]
        %v1304 = vld [vmem:[%s3 + $0x8] sm:$0xff]
        %v1305 = vld [vmem:[%s3 + $0x10] sm:$0xff]
        %v1306 = vld [vmem:[%s3 + $0x18] sm:$0xff]
        %v1307 = vld [vmem:[%s3 + $0x20] sm:$0xff]
        %v1308 = vld [vmem:[%s3 + $0x28] sm:$0xff]
        %v1309 = vld [vmem:[%s3 + $0x30] sm:$0xff]
        %v1310 = vld [vmem:[%s3 + $0x38] sm:$0xff]
        %v1311 = vld [vmem:[%s3 + $0x40] sm:$0xff]
        %v1312 = vld [vmem:[%s3 + $0x48] sm:$0xff]
        %v1313 = vld [vmem:[%s3 + $0x50] sm:$0xff]
        %v1314 = vld [vmem:[%s3 + $0x58] sm:$0xff]
        %v1315 = vld [vmem:[%s3 + $0x60] sm:$0xff]
        %v1316 = vld [vmem:[%s3 + $0x68] sm:$0xff]
        %v1317 = vld [vmem:[%s3 + $0x70] sm:$0xff]
        %v1318 = vld [vmem:[%s3 + $0x78] sm:$0xff]
        %v1319 = vld [vmem:[%s3 + $0x80] sm:$0xff]
        %1321 = vset.pattern.permute.xlu0 0
        %1322 = vperm.xlu0 %1321, %v1303
        %v1323 = vpop.permute.xlu0 %1322
        %1326 = vset.pattern.permute.xlu0 0
        %1327 = vperm.xlu0 %1326, %v1304
        %v1328 = vpop.permute.xlu0 %1327
        %1331 = vset.pattern.permute.xlu0 0
        %1332 = vperm.xlu0 %1331, %v1305
        %v1333 = vpop.permute.xlu0 %1332
        %1336 = vset.pattern.permute.xlu0 0
        %1337 = vperm.xlu0 %1336, %v1306
        %v1338 = vpop.permute.xlu0 %1337
        %1341 = vset.pattern.permute.xlu0 0
        %1342 = vperm.xlu0 %1341, %v1307
        %v1343 = vpop.permute.xlu0 %1342
        %1346 = vset.pattern.permute.xlu0 0
        %1347 = vperm.xlu0 %1346, %v1308
        %v1348 = vpop.permute.xlu0 %1347
        %1351 = vset.pattern.permute.xlu0 0
        %1352 = vperm.xlu0 %1351, %v1309
        %v1353 = vpop.permute.xlu0 %1352
        %1356 = vset.pattern.permute.xlu0 0
        %1357 = vperm.xlu0 %1356, %v1310
        %v1358 = vpop.permute.xlu0 %1357
        %1361 = vset.pattern.permute.xlu0 0
        %1362 = vperm.xlu0 %1361, %v1311
        %v1363 = vpop.permute.xlu0 %1362
        %1366 = vset.pattern.permute.xlu0 0
        %1367 = vperm.xlu0 %1366, %v1312
        %v1368 = vpop.permute.xlu0 %1367
        %1371 = vset.pattern.permute.xlu0 0
        %1372 = vperm.xlu0 %1371, %v1313
        %v1373 = vpop.permute.xlu0 %1372
        %1376 = vset.pattern.permute.xlu0 0
        %1377 = vperm.xlu0 %1376, %v1314
        %v1378 = vpop.permute.xlu0 %1377
        %1381 = vset.pattern.permute.xlu0 0
        %1382 = vperm.xlu0 %1381, %v1315
        %v1383 = vpop.permute.xlu0 %1382
        %1386 = vset.pattern.permute.xlu0 0
        %1387 = vperm.xlu0 %1386, %v1316
        %v1388 = vpop.permute.xlu0 %1387
        %1391 = vset.pattern.permute.xlu0 0
        %1392 = vperm.xlu0 %1391, %v1317
        %v1393 = vpop.permute.xlu0 %1392
        %1396 = vset.pattern.permute.xlu0 0
        %1397 = vperm.xlu0 %1396, %v1318
        %v1398 = vpop.permute.xlu0 %1397
        %1401 = vset.pattern.permute.xlu0 0
        %1402 = vperm.xlu0 %1401, %v1319
        %v1403 = vpop.permute.xlu0 %1402
        %v1405 = vmax.f32 %v1269, %v1323
        %v1406 = vmax.f32 %v1270, %v1323
        %v1407 = vmax.f32 %v1271, %v1328
        %v1408 = vmax.f32 %v1272, %v1328
        %v1409 = vmax.f32 %v1273, %v1333
        %v1410 = vmax.f32 %v1274, %v1333
        %v1411 = vmax.f32 %v1275, %v1338
        %v1412 = vmax.f32 %v1276, %v1338
        %v1413 = vmax.f32 %v1277, %v1343
        %v1414 = vmax.f32 %v1278, %v1343
        %v1415 = vmax.f32 %v1279, %v1348
        %v1416 = vmax.f32 %v1280, %v1348
        %v1417 = vmax.f32 %v1281, %v1353
        %v1418 = vmax.f32 %v1282, %v1353
        %v1419 = vmax.f32 %v1283, %v1358
        %v1420 = vmax.f32 %v1284, %v1358
        %v1421 = vmax.f32 %v1285, %v1363
        %v1422 = vmax.f32 %v1286, %v1363
        %v1423 = vmax.f32 %v1287, %v1368
        %v1424 = vmax.f32 %v1288, %v1368
        %v1425 = vmax.f32 %v1289, %v1373
        %v1426 = vmax.f32 %v1290, %v1373
        %v1427 = vmax.f32 %v1291, %v1378
        %v1428 = vmax.f32 %v1292, %v1378
        %v1429 = vmax.f32 %v1293, %v1383
        %v1430 = vmax.f32 %v1294, %v1383
        %v1431 = vmax.f32 %v1295, %v1388
        %v1432 = vmax.f32 %v1296, %v1388
        %v1433 = vmax.f32 %v1297, %v1393
        %v1434 = vmax.f32 %v1298, %v1393
        %v1435 = vmax.f32 %v1299, %v1398
        %v1436 = vmax.f32 %v1300, %v1398
        %v1437 = vmax.f32 %v1301, %v1403
        %v1438 = vmax.f32 %v1302, %v1403
        %v1439 = vrsqrt.pop %v1405
        %v1440 = vmul.f32 %v1405, %v1439
        %vm1441 = vcmp.eq.f32.partialorder %v1405, inf
        %v1442 = vsel %vm1441, %v1405, %v1440
        %vm1443 = vcmp.eq.f32.partialorder %v1405, 0.0
        %v1444 = vand.u32 %v1405, 2147483648
        %v1445 = vsel %vm1443, %v1444, %v1442
        %v1446 = vrsqrt.pop %v1406
        %v1447 = vmul.f32 %v1406, %v1446
        %vm1448 = vcmp.eq.f32.partialorder %v1406, inf
        %v1449 = vsel %vm1448, %v1406, %v1447
        %vm1450 = vcmp.eq.f32.partialorder %v1406, 0.0
        %v1451 = vand.u32 %v1406, 2147483648
        %v1452 = vsel %vm1450, %v1451, %v1449
        %v1453 = vrsqrt.pop %v1407
        %v1454 = vmul.f32 %v1407, %v1453
        %vm1455 = vcmp.eq.f32.partialorder %v1407, inf
        %v1456 = vsel %vm1455, %v1407, %v1454
        %vm1457 = vcmp.eq.f32.partialorder %v1407, 0.0
        %v1458 = vand.u32 %v1407, 2147483648
        %v1459 = vsel %vm1457, %v1458, %v1456
        %v1460 = vrsqrt.pop %v1408
        %v1461 = vmul.f32 %v1408, %v1460
        %vm1462 = vcmp.eq.f32.partialorder %v1408, inf
        %v1463 = vsel %vm1462, %v1408, %v1461
        %vm1464 = vcmp.eq.f32.partialorder %v1408, 0.0
        %v1465 = vand.u32 %v1408, 2147483648
        %v1466 = vsel %vm1464, %v1465, %v1463
        %v1467 = vrsqrt.pop %v1409
        %v1468 = vmul.f32 %v1409, %v1467
        %vm1469 = vcmp.eq.f32.partialorder %v1409, inf
        %v1470 = vsel %vm1469, %v1409, %v1468
        %vm1471 = vcmp.eq.f32.partialorder %v1409, 0.0
        %v1472 = vand.u32 %v1409, 2147483648
        %v1473 = vsel %vm1471, %v1472, %v1470
        %v1474 = vrsqrt.pop %v1410
        %v1475 = vmul.f32 %v1410, %v1474
        %vm1476 = vcmp.eq.f32.partialorder %v1410, inf
        %v1477 = vsel %vm1476, %v1410, %v1475
        %vm1478 = vcmp.eq.f32.partialorder %v1410, 0.0
        %v1479 = vand.u32 %v1410, 2147483648
        %v1480 = vsel %vm1478, %v1479, %v1477
        %v1481 = vrsqrt.pop %v1411
        %v1482 = vmul.f32 %v1411, %v1481
        %vm1483 = vcmp.eq.f32.partialorder %v1411, inf
        %v1484 = vsel %vm1483, %v1411, %v1482
        %vm1485 = vcmp.eq.f32.partialorder %v1411, 0.0
        %v1486 = vand.u32 %v1411, 2147483648
        %v1487 = vsel %vm1485, %v1486, %v1484
        %v1488 = vrsqrt.pop %v1412
        %v1489 = vmul.f32 %v1412, %v1488
        %vm1490 = vcmp.eq.f32.partialorder %v1412, inf
        %v1491 = vsel %vm1490, %v1412, %v1489
        %vm1492 = vcmp.eq.f32.partialorder %v1412, 0.0
        %v1493 = vand.u32 %v1412, 2147483648
        %v1494 = vsel %vm1492, %v1493, %v1491
        %v1495 = vrsqrt.pop %v1413
        %v1496 = vmul.f32 %v1413, %v1495
        %vm1497 = vcmp.eq.f32.partialorder %v1413, inf
        %v1498 = vsel %vm1497, %v1413, %v1496
        %vm1499 = vcmp.eq.f32.partialorder %v1413, 0.0
        %v1500 = vand.u32 %v1413, 2147483648
        %v1501 = vsel %vm1499, %v1500, %v1498
        %v1502 = vrsqrt.pop %v1414
        %v1503 = vmul.f32 %v1414, %v1502
        %vm1504 = vcmp.eq.f32.partialorder %v1414, inf
        %v1505 = vsel %vm1504, %v1414, %v1503
        %vm1506 = vcmp.eq.f32.partialorder %v1414, 0.0
        %v1507 = vand.u32 %v1414, 2147483648
        %v1508 = vsel %vm1506, %v1507, %v1505
        %v1509 = vrsqrt.pop %v1415
        %v1510 = vmul.f32 %v1415, %v1509
        %vm1511 = vcmp.eq.f32.partialorder %v1415, inf
        %v1512 = vsel %vm1511, %v1415, %v1510
        %vm1513 = vcmp.eq.f32.partialorder %v1415, 0.0
        %v1514 = vand.u32 %v1415, 2147483648
        %v1515 = vsel %vm1513, %v1514, %v1512
        %v1516 = vrsqrt.pop %v1416
        %v1517 = vmul.f32 %v1416, %v1516
        %vm1518 = vcmp.eq.f32.partialorder %v1416, inf
        %v1519 = vsel %vm1518, %v1416, %v1517
        %vm1520 = vcmp.eq.f32.partialorder %v1416, 0.0
        %v1521 = vand.u32 %v1416, 2147483648
        %v1522 = vsel %vm1520, %v1521, %v1519
        %v1523 = vrsqrt.pop %v1417
        %v1524 = vmul.f32 %v1417, %v1523
        %vm1525 = vcmp.eq.f32.partialorder %v1417, inf
        %v1526 = vsel %vm1525, %v1417, %v1524
        %vm1527 = vcmp.eq.f32.partialorder %v1417, 0.0
        %v1528 = vand.u32 %v1417, 2147483648
        %v1529 = vsel %vm1527, %v1528, %v1526
        %v1530 = vrsqrt.pop %v1418
        %v1531 = vmul.f32 %v1418, %v1530
        %vm1532 = vcmp.eq.f32.partialorder %v1418, inf
        %v1533 = vsel %vm1532, %v1418, %v1531
        %vm1534 = vcmp.eq.f32.partialorder %v1418, 0.0
        %v1535 = vand.u32 %v1418, 2147483648
        %v1536 = vsel %vm1534, %v1535, %v1533
        %v1537 = vrsqrt.pop %v1419
        %v1538 = vmul.f32 %v1419, %v1537
        %vm1539 = vcmp.eq.f32.partialorder %v1419, inf
        %v1540 = vsel %vm1539, %v1419, %v1538
        %vm1541 = vcmp.eq.f32.partialorder %v1419, 0.0
        %v1542 = vand.u32 %v1419, 2147483648
        %v1543 = vsel %vm1541, %v1542, %v1540
        %v1544 = vrsqrt.pop %v1420
        %v1545 = vmul.f32 %v1420, %v1544
        %vm1546 = vcmp.eq.f32.partialorder %v1420, inf
        %v1547 = vsel %vm1546, %v1420, %v1545
        %vm1548 = vcmp.eq.f32.partialorder %v1420, 0.0
        %v1549 = vand.u32 %v1420, 2147483648
        %v1550 = vsel %vm1548, %v1549, %v1547
        %v1551 = vrsqrt.pop %v1421
        %v1552 = vmul.f32 %v1421, %v1551
        %vm1553 = vcmp.eq.f32.partialorder %v1421, inf
        %v1554 = vsel %vm1553, %v1421, %v1552
        %vm1555 = vcmp.eq.f32.partialorder %v1421, 0.0
        %v1556 = vand.u32 %v1421, 2147483648
        %v1557 = vsel %vm1555, %v1556, %v1554
        %v1558 = vrsqrt.pop %v1422
        %v1559 = vmul.f32 %v1422, %v1558
        %vm1560 = vcmp.eq.f32.partialorder %v1422, inf
        %v1561 = vsel %vm1560, %v1422, %v1559
        %vm1562 = vcmp.eq.f32.partialorder %v1422, 0.0
        %v1563 = vand.u32 %v1422, 2147483648
        %v1564 = vsel %vm1562, %v1563, %v1561
        %v1565 = vrsqrt.pop %v1423
        %v1566 = vmul.f32 %v1423, %v1565
        %vm1567 = vcmp.eq.f32.partialorder %v1423, inf
        %v1568 = vsel %vm1567, %v1423, %v1566
        %vm1569 = vcmp.eq.f32.partialorder %v1423, 0.0
        %v1570 = vand.u32 %v1423, 2147483648
        %v1571 = vsel %vm1569, %v1570, %v1568
        %v1572 = vrsqrt.pop %v1424
        %v1573 = vmul.f32 %v1424, %v1572
        %vm1574 = vcmp.eq.f32.partialorder %v1424, inf
        %v1575 = vsel %vm1574, %v1424, %v1573
        %vm1576 = vcmp.eq.f32.partialorder %v1424, 0.0
        %v1577 = vand.u32 %v1424, 2147483648
        %v1578 = vsel %vm1576, %v1577, %v1575
        %v1579 = vrsqrt.pop %v1425
        %v1580 = vmul.f32 %v1425, %v1579
        %vm1581 = vcmp.eq.f32.partialorder %v1425, inf
        %v1582 = vsel %vm1581, %v1425, %v1580
        %vm1583 = vcmp.eq.f32.partialorder %v1425, 0.0
        %v1584 = vand.u32 %v1425, 2147483648
        %v1585 = vsel %vm1583, %v1584, %v1582
        %v1586 = vrsqrt.pop %v1426
        %v1587 = vmul.f32 %v1426, %v1586
        %vm1588 = vcmp.eq.f32.partialorder %v1426, inf
        %v1589 = vsel %vm1588, %v1426, %v1587
        %vm1590 = vcmp.eq.f32.partialorder %v1426, 0.0
        %v1591 = vand.u32 %v1426, 2147483648
        %v1592 = vsel %vm1590, %v1591, %v1589
        %v1593 = vrsqrt.pop %v1427
        %v1594 = vmul.f32 %v1427, %v1593
        %vm1595 = vcmp.eq.f32.partialorder %v1427, inf
        %v1596 = vsel %vm1595, %v1427, %v1594
        %vm1597 = vcmp.eq.f32.partialorder %v1427, 0.0
        %v1598 = vand.u32 %v1427, 2147483648
        %v1599 = vsel %vm1597, %v1598, %v1596
        %v1600 = vrsqrt.pop %v1428
        %v1601 = vmul.f32 %v1428, %v1600
        %vm1602 = vcmp.eq.f32.partialorder %v1428, inf
        %v1603 = vsel %vm1602, %v1428, %v1601
        %vm1604 = vcmp.eq.f32.partialorder %v1428, 0.0
        %v1605 = vand.u32 %v1428, 2147483648
        %v1606 = vsel %vm1604, %v1605, %v1603
        %v1607 = vrsqrt.pop %v1429
        %v1608 = vmul.f32 %v1429, %v1607
        %vm1609 = vcmp.eq.f32.partialorder %v1429, inf
        %v1610 = vsel %vm1609, %v1429, %v1608
        %vm1611 = vcmp.eq.f32.partialorder %v1429, 0.0
        %v1612 = vand.u32 %v1429, 2147483648
        %v1613 = vsel %vm1611, %v1612, %v1610
        %v1614 = vrsqrt.pop %v1430
        %v1615 = vmul.f32 %v1430, %v1614
        %vm1616 = vcmp.eq.f32.partialorder %v1430, inf
        %v1617 = vsel %vm1616, %v1430, %v1615
        %vm1618 = vcmp.eq.f32.partialorder %v1430, 0.0
        %v1619 = vand.u32 %v1430, 2147483648
        %v1620 = vsel %vm1618, %v1619, %v1617
        %v1621 = vrsqrt.pop %v1431
        %v1622 = vmul.f32 %v1431, %v1621
        %vm1623 = vcmp.eq.f32.partialorder %v1431, inf
        %v1624 = vsel %vm1623, %v1431, %v1622
        %vm1625 = vcmp.eq.f32.partialorder %v1431, 0.0
        %v1626 = vand.u32 %v1431, 2147483648
        %v1627 = vsel %vm1625, %v1626, %v1624
        %v1628 = vrsqrt.pop %v1432
        %v1629 = vmul.f32 %v1432, %v1628
        %vm1630 = vcmp.eq.f32.partialorder %v1432, inf
        %v1631 = vsel %vm1630, %v1432, %v1629
        %vm1632 = vcmp.eq.f32.partialorder %v1432, 0.0
        %v1633 = vand.u32 %v1432, 2147483648
        %v1634 = vsel %vm1632, %v1633, %v1631
        %v1635 = vrsqrt.pop %v1433
        %v1636 = vmul.f32 %v1433, %v1635
        %vm1637 = vcmp.eq.f32.partialorder %v1433, inf
        %v1638 = vsel %vm1637, %v1433, %v1636
        %vm1639 = vcmp.eq.f32.partialorder %v1433, 0.0
        %v1640 = vand.u32 %v1433, 2147483648
        %v1641 = vsel %vm1639, %v1640, %v1638
        %v1642 = vrsqrt.pop %v1434
        %v1643 = vmul.f32 %v1434, %v1642
        %vm1644 = vcmp.eq.f32.partialorder %v1434, inf
        %v1645 = vsel %vm1644, %v1434, %v1643
        %vm1646 = vcmp.eq.f32.partialorder %v1434, 0.0
        %v1647 = vand.u32 %v1434, 2147483648
        %v1648 = vsel %vm1646, %v1647, %v1645
        %v1649 = vrsqrt.pop %v1435
        %v1650 = vmul.f32 %v1435, %v1649
        %vm1651 = vcmp.eq.f32.partialorder %v1435, inf
        %v1652 = vsel %vm1651, %v1435, %v1650
        %vm1653 = vcmp.eq.f32.partialorder %v1435, 0.0
        %v1654 = vand.u32 %v1435, 2147483648
        %v1655 = vsel %vm1653, %v1654, %v1652
        %v1656 = vrsqrt.pop %v1436
        %v1657 = vmul.f32 %v1436, %v1656
        %vm1658 = vcmp.eq.f32.partialorder %v1436, inf
        %v1659 = vsel %vm1658, %v1436, %v1657
        %vm1660 = vcmp.eq.f32.partialorder %v1436, 0.0
        %v1661 = vand.u32 %v1436, 2147483648
        %v1662 = vsel %vm1660, %v1661, %v1659
        %v1663 = vrsqrt.pop %v1437
        %v1664 = vmul.f32 %v1437, %v1663
        %vm1665 = vcmp.eq.f32.partialorder %v1437, inf
        %v1666 = vsel %vm1665, %v1437, %v1664
        %vm1667 = vcmp.eq.f32.partialorder %v1437, 0.0
        %v1668 = vand.u32 %v1437, 2147483648
        %v1669 = vsel %vm1667, %v1668, %v1666
        %v1670 = vrsqrt.pop %v1438
        %v1671 = vmul.f32 %v1438, %v1670
        %vm1672 = vcmp.eq.f32.partialorder %v1438, inf
        %v1673 = vsel %vm1672, %v1438, %v1671
        %vm1674 = vcmp.eq.f32.partialorder %v1438, 0.0
        %v1675 = vand.u32 %v1438, 2147483648
        %v1676 = vsel %vm1674, %v1675, %v1673
        %v1677 = vadd.f32 %v1445, %v1459
        %v1678 = vadd.f32 %v1677, %v1473
        %v1679 = vadd.f32 %v1678, %v1487
        %v1680 = vadd.f32 %v1679, %v1501
        %v1681 = vadd.f32 %v1680, %v1515
        %v1682 = vadd.f32 %v1681, %v1529
        %v1683 = vadd.f32 %v1682, %v1543
        %v1684 = vadd.f32 %v1683, %v1557
        %v1685 = vadd.f32 %v1684, %v1571
        %v1686 = vadd.f32 %v1685, %v1585
        %v1687 = vadd.f32 %v1686, %v1599
        %v1688 = vadd.f32 %v1687, %v1613
        %v1689 = vadd.f32 %v1688, %v1627
        %v1690 = vadd.f32 %v1689, %v1641
        %v1691 = vadd.f32 %v1690, %v1655
        %v1692 = vadd.f32 %v1691, %v1669
        %v1693 = vrot.slane %v1692, 4
        %v1694 = vadd.f32 %v1692, %v1693
        %v1695 = vrot.slane %v1694, 2
        %v1696 = vadd.f32 %v1694, %v1695
        %v1697 = vrot.slane %v1696, 1
        %v1698 = vadd.f32 %v1696, %v1697
        %v1699 = vadd.f32 %v1452, %v1466
        %v1700 = vadd.f32 %v1699, %v1480
        %v1701 = vadd.f32 %v1700, %v1494
        %v1702 = vadd.f32 %v1701, %v1508
        %v1703 = vadd.f32 %v1702, %v1522
        %v1704 = vadd.f32 %v1703, %v1536
        %v1705 = vadd.f32 %v1704, %v1550
        %v1706 = vadd.f32 %v1705, %v1564
        %v1707 = vadd.f32 %v1706, %v1578
        %v1708 = vadd.f32 %v1707, %v1592
        %v1709 = vadd.f32 %v1708, %v1606
        %v1710 = vadd.f32 %v1709, %v1620
        %v1711 = vadd.f32 %v1710, %v1634
        %v1712 = vadd.f32 %v1711, %v1648
        %v1713 = vadd.f32 %v1712, %v1662
        %v1714 = vadd.f32 %v1713, %v1676
        %v1715 = vrot.slane %v1714, 4
        %v1716 = vadd.f32 %v1714, %v1715
        %v1717 = vrot.slane %v1716, 2
        %v1718 = vadd.f32 %v1716, %v1717
        %v1719 = vrot.slane %v1718, 1
        %v1720 = vadd.f32 %v1718, %v1719
        %v1721 = vmul.f32 %v1698, 0.007751938
        %v1722 = vmul.f32 %v1720, 0.007751938
        %v1723 = vmax.f32 %v1721, 1e-10
        %v1724 = vmax.f32 %v1722, 1e-10
        %v1725 = vlog2.pop %v1723
        %v1726 = vmul.f32 %v1725, 0.6931472
        %v1727 = vlog2.pop %v1724
        %v1728 = vmul.f32 %v1727, 0.6931472
        %v1729 = vmul.f32 %v1726, 0.4342945
        %v1730 = vmul.f32 %v1728, 0.4342945
        %v1731 = vmul.f32 %v1729, 10.0
        %v1732 = vmul.f32 %v1730, 10.0
        %s1733 = sld [smem:[#allocation3]]
        %v1734 = vstv %s1733
        %v1735 = vadd.f32 %v1731, %v1734
        %v1736 = vadd.f32 %v1732, %v1734
        %s1737 = sld [smem:[#allocation3 + $0x1]]
        %v1738 = vstv %s1737
        %v1739 = vmul.f32 %v1735, %v1738
        %v1740 = vmul.f32 %v1736, %v1738
        %v1743 = vcombine.low %v1739, %v1740
        %v1745 = vunpack.c.l.s4 1966171168
        %v1746 = vunpack.c.0.s8 %v1745
        %v1747 = vlaneseq
        %v1748 = vshrl.u32 %v1747, 7
        %v1749 = vsub.s32 %v1746, %v1748
        %v1750 = vrot.slane %v1743, %v1749
        %v1752 = vunpack.c.l.s4 1966171168
        %v1753 = vunpack.c.0.s8 %v1752
        %v1754 = vlaneseq
        %v1755 = vshrl.u32 %v1754, 7
        %v1756 = vsub.s32 %v1753, %v1755
        %v1757 = vrot.slane %v1750, %v1756
        %v1759 = vlaneseq
        %vm1760 = vcmp.ge.s32.totalorder %v1759, 0
        %vm1761 = vcmp.lt.s32.totalorder %v1759, 256
        %vm1762 = vmand %vm1760, %vm1761
        %1763 = vst.msk [vmem:[%s244] sm:$0x3] %vm1762, %v1757
        %s1764 = sand.u32 %s120, 1
        %s1765 = scalar_lea.sflag [#allocation5], %s1764
        %s1766 = sand.u32 %s120, 1
        %s1767 = smul.addr %s1766, 2
        %s1768 = scalar_lea.vmem [#allocation10], %s1767
        // Predicated region
        $region49: #{tpu_custom_call.1} parent=35 // pred_check
          %p1769 = pneg %p130
        $region50: #{tpu_custom_call.1} parent=35 // pred_check_branch
          %1771 = sbr.rel (%p1769) target = $region52
        $region51: #{tpu_custom_call.1} parent=35 // pred_region
          %s1772 = smul.u32 2, %s23
          %s1774 = ssub.s32 32, 32
          %1775 = vsyncadd %s1765, %s1774
          %s1776 = smul.addr %s1772, 16
          %s1777 = scalar_lea.hbm %s4, %s1776
          %s1779 = sshll.u32 %s1768, 4
          %s1780 = int_to_ptr.vmem [resolvable:$true] %s1779
          %1782 = dma.vmem_to_hbm [thread:$0]  %s1780, 32, %s1777, %s1765
        $region52: #{tpu_custom_call.1} parent=35 // pred_fallthru
          _
      $region36: #{tpu_custom_call.1} parent=5 // pred_fallthru
        _
      %p1783 = scmp.le.s32.totalorder 2, %s18
      // Predicated region
      $region53: #{tpu_custom_call.1} parent=5 // pred_check
        %p1784 = pneg %p1783
      $region54: #{tpu_custom_call.1} parent=5 // pred_check_branch
        %1786 = sbr.rel (%p1784) target = $region56
      $region55: #{tpu_custom_call.1} parent=5 // pred_region
        %s1787 = ssub.s32 %s18, 2
        // Predicated region
        $region57: #{tpu_custom_call.1} parent=55 // pred_check
          %p1788 = pneg %p136
        $region58: #{tpu_custom_call.1} parent=55 // pred_check_branch
          %1790 = sbr.rel (%p1788) target = $region60
        $region59: #{tpu_custom_call.1} parent=55 // pred_region
          %s1791 = sand.u32 %s121, 1
          %s1792 = scalar_lea.sflag [#allocation5], %s1791
          %s1793 = sand.u32 %s121, 1
          %s1794 = smul.addr %s1793, 2
          %s1795 = scalar_lea.vmem [#allocation10], %s1794
          %1796 = dma.done %s1792, 32
        $region60: #{tpu_custom_call.1} parent=55 // pred_fallthru
          _
      $region56: #{tpu_custom_call.1} parent=5 // pred_fallthru
        _
    $region6: #{tpu_custom_call.1} parent=1 // loop_footer
      %s22 = sadd.s32 1, %s18
    $region7: #{tpu_custom_call.1} parent=1 // loop_footer_branch
      %17 = sbr.rel target = $region3
    $region8: #{tpu_custom_call.1} parent=1 // loop_exit
      _
    %1797 = vsyncpa [#allocation4], 1
    %s1798 = scalar_lea.sflag [#allocation4], 1
    %1799 = vsyncpa %s1798, 1
    %1800 = vsyncpa [#allocation9], 1
    %1801 = vsyncpa [#allocation5], 1
    %s1802 = scalar_lea.sflag [#allocation5], 1
    %1803 = vsyncpa %s1802, 1
    %1804 = vsyncpa [#allocation6], 1
    %s1805 = scalar_lea.sflag [#allocation6], 1
    %1806 = vsyncpa %s1805, 1

</llo_original>
